<compile_context>
chip_gen: v7x
topology: tpu7x:2x2x1
jax: 0.10.0
libtpu: 0.0.40
codegen_flags: <defaults>
</compile_context>

<pallas_src>
import jax
import jax.numpy as jnp
from jax.experimental import pallas as pl
from jax.experimental.pallas import tpu as pltpu


# ---------------------------------------------------------------------------
# Fused kernel
# ---------------------------------------------------------------------------
def _fused_lstm_ner_kernel(ids_ref, emb_ref,
                           wih0_ref, whh0_ref, b0_ref,
                           wih1_ref, whh1_ref, b1_ref,
                           wout_ref, bout_ref,
                           out_ref, p_scr, h_seq):
    """Fused forward: embedding gather + 2 LSTM layers + linear classifier.

    ids_ref : (B, S)        int32, SMEM  token ids
    emb_ref : (V, 1, E)     f32,   VMEM  embedding table (leading-dim gather)
    wih*_ref: (D_in, 4H)    bf16,  VMEM  packed input weights   [i|f|o|g]
    whh*_ref: (H, 4H)       bf16,  VMEM  packed recurrent weights
    b*_ref  : (1, 4H)       f32,   VMEM  folded b_ih + b_hh
    wout_ref: (H, T)        bf16,  VMEM  classifier weight
    bout_ref: (1, T)        f32,   VMEM  classifier bias
    out_ref : (S*B, T)      f32,   VMEM  logits, time-major rows (t*B + b)
    p_scr   : (S*B, 4H)     f32,   VMEM scratch - hoisted input projections
    h_seq   : (S*B, H)      f32,   VMEM scratch - hidden states over time
    """
    B, S = ids_ref.shape
    H = whh0_ref.shape[0]
    f32, bf16 = jnp.float32, jnp.bfloat16

    # --- Prologue: embedding gather, once, off the serial path --------------
    # Time-major rows (row = t*B + b) so each recurrence step reads a
    # contiguous (B, 4H) slab from p_scr.
    rows = [emb_ref[ids_ref[b, t]] for t in range(S) for b in range(B)]
    x0 = jnp.concatenate(rows, axis=0)                           # (S*B, E) f32

    # --- Layer-0 input projection + folded bias, hoisted --------------------
    p_scr[...] = (jnp.dot(x0.astype(bf16), wih0_ref[...],
                          preferred_element_type=f32)
                  + b0_ref[...])                                 # (S*B, 4H)

    # Recurrent weights loaded once (bf16 lives only on MXU operands).
    whh0 = whh0_ref[...]
    whh1 = whh1_ref[...]

    def lstm_cell(pre, c_prev):
        # Packed gate order [i | f | o | g]: one sigmoid over the contiguous
        # three sigmoid-gate quarters + one tanh over the last quarter
        # (2 EUP pushes per cell instead of 4).  All gate math in f32.
        sifo = jax.nn.sigmoid(pre[:, :3 * H])                    # (B, 3H)
        g = jnp.tanh(pre[:, 3 * H:])                             # (B, H)
        i, f, o = sifo[:, :H], sifo[:, H:2 * H], sifo[:, 2 * H:]
        c_new = f * c_prev + i * g
        h_new = o * jnp.tanh(c_new)
        return h_new, c_new

    def make_step(whh):
        def step(t, carry):
            h, c = carry
            r = pl.multiple_of(t * B, B)
            pre = p_scr[pl.ds(r, B), :] + jnp.dot(
                h.astype(bf16), whh, preferred_element_type=f32)
            h, c = lstm_cell(pre, c)
            h_seq[pl.ds(r, B), :] = h
            return (h, c)
        return step

    z = jnp.zeros((B, H), f32)   # zero initial h / c (PyTorch default)

    # --- Layer-1 recurrence: one (B,H)@(H,4H) dot per step ------------------
    # TODO(synk): at production S (128-512) replace unroll=True with a tuned
    # partial unroll (4-8) to bound code size / vreg live ranges.
    jax.lax.fori_loop(0, S, make_step(whh0), (z, z), unroll=True)

    # --- Layer-1 -> layer-2 input projection, hoisted (reuses p_scr) --------
    # Inter-layer dropout (p=0.3) is identity at eval time.
    p_scr[...] = (jnp.dot(h_seq[...].astype(bf16), wih1_ref[...],
                          preferred_element_type=f32)
                  + b1_ref[...])

    # --- Layer-2 recurrence (overwrites h_seq; layer-1 states are dead) -----
    jax.lax.fori_loop(0, S, make_step(whh1), (z, z), unroll=True)

    # --- Classifier epilogue: ONE (S*B, H)@(H, T) dot, one bulk store -------
    out_ref[...] = (jnp.dot(h_seq[...].astype(bf16), wout_ref[...],
                            preferred_element_type=f32)
                    + bout_ref[...])


# ---------------------------------------------------------------------------
# Wrapper
# ---------------------------------------------------------------------------
@jax.jit
def lstm_ner_forward(params, token_ids):
    """token_ids: (B, S) int32 -> logits (B, S, num_tags) f32."""
    B, S = token_ids.shape
    H = params["layer0"]["w_hh"].shape[0]
    T = params["w_out"].shape[-1]

    # (V, E) -> (V, 1, E): per-token row gather is a leading-dim dynamic index.
    # TODO(synk): at production vocab keep this in HBM (pl.ANY) + DMA-gather.
    emb3 = params["embedding"][:, None, :]

    vmem = pltpu.MemorySpace.VMEM
    smem = pltpu.MemorySpace.SMEM
    out2d = pl.pallas_call(
        _fused_lstm_ner_kernel,
        out_shape=jax.ShapeDtypeStruct((S * B, T), jnp.float32),
        in_specs=[pl.BlockSpec(memory_space=smem)]        # token ids
        + [pl.BlockSpec(memory_space=vmem)] * 9,          # table + weights
        out_specs=pl.BlockSpec(memory_space=vmem),
        scratch_shapes=[
            pltpu.VMEM((S * B, 4 * H), jnp.float32),      # pre-activation slab
            pltpu.VMEM((S * B, H), jnp.float32),          # hidden-state slab
        ],
    )(
        token_ids,
        emb3,
        params["layer0"]["w_ih"], params["layer0"]["w_hh"], params["layer0"]["b"],
        params["layer1"]["w_ih"], params["layer1"]["w_hh"], params["layer1"]["b"],
        params["w_out"], params["b_out"],
    )
    # Time-major (t*B + b, T) -> batch-first (B, S, T).  Pure layout plumbing.
    return out2d.reshape(S, B, T).transpose(1, 0, 2)


# ---------------------------------------------------------------------------
# Parameter construction
# ---------------------------------------------------------------------------
def init_params(key, vocab_size, embedding_dim, hidden_dim, num_tags):
    ks = iter(jax.random.split(key, 16))
    scale = 1.0 / jnp.sqrt(hidden_dim)

    def uniform(k, shape, dtype=jnp.float32):
        return jax.random.uniform(k, shape, jnp.float32, -scale, scale).astype(dtype)

    def lstm_layer(d_in):
        # Packed gate axis order [i | f | o | g]; bf16 weights (MXU operands),
        # f32 folded bias (b_ih + b_hh, exact for LSTM gate math).
        return {
            "w_ih": uniform(next(ks), (d_in, 4 * hidden_dim), jnp.bfloat16),
            "w_hh": uniform(next(ks), (hidden_dim, 4 * hidden_dim), jnp.bfloat16),
            "b": uniform(next(ks), (1, 4 * hidden_dim))
                 + uniform(next(ks), (1, 4 * hidden_dim)),
        }

    return {
        "embedding": jax.random.normal(
            next(ks), (vocab_size, embedding_dim), jnp.float32) * 0.1,
        "layer0": lstm_layer(embedding_dim),
        "layer1": lstm_layer(hidden_dim),
        "w_out": uniform(next(ks), (hidden_dim, num_tags), jnp.bfloat16),
        "b_out": uniform(next(ks), (1, num_tags)),
    }


if __name__ == "__main__":
    VOCAB_SIZE = 50
    EMBEDDING_DIM = 32
    HIDDEN_DIM = 32
    NUM_TAGS = 8
    BATCH = 2
    SEQ = 8

    key = jax.random.PRNGKey(0)
    pkey, xkey = jax.random.split(key)

    params = init_params(pkey, VOCAB_SIZE, EMBEDDING_DIM, HIDDEN_DIM, NUM_TAGS)
    token_ids = jax.random.randint(xkey, (BATCH, SEQ), 0, VOCAB_SIZE, jnp.int32)

    logits = lstm_ner_forward(params, token_ids)
    jax.block_until_ready(logits)

    assert logits.shape == (BATCH, SEQ, NUM_TAGS), logits.shape
    assert logits.dtype == jnp.float32
    print("KERNEL_OK")
</pallas_src>

<mosaic_0001>
module attributes {stable_mosaic.version = 11 : i64} {
  func.func @_fused_lstm_ner_kernel(%arg0: memref<2x8xi32, #tpu.memory_space<smem>>, %arg1: memref<50x1x32xf32, #tpu.memory_space<vmem>>, %arg2: memref<32x128xbf16, #tpu.memory_space<vmem>>, %arg3: memref<32x128xbf16, #tpu.memory_space<vmem>>, %arg4: memref<1x128xf32, #tpu.memory_space<vmem>>, %arg5: memref<32x128xbf16, #tpu.memory_space<vmem>>, %arg6: memref<32x128xbf16, #tpu.memory_space<vmem>>, %arg7: memref<1x128xf32, #tpu.memory_space<vmem>>, %arg8: memref<32x8xbf16, #tpu.memory_space<vmem>>, %arg9: memref<1x8xf32, #tpu.memory_space<vmem>>, %arg10: memref<16x8xf32, #tpu.memory_space<vmem>>, %arg11: memref<16x128xf32, #tpu.memory_space<vmem>>, %arg12: memref<16x32xf32, #tpu.memory_space<vmem>>) attributes {dimension_semantics = [], scalar_prefetch = 0 : i64, scratch_operands = 2 : i64, tpu.core_type = #tpu.core_type<tc>} {
    %c0 = arith.constant 0 : index
    %c0_0 = arith.constant 0 : index
    %0 = memref.load %arg0[%c0, %c0_0] : memref<2x8xi32, #tpu.memory_space<smem>>
    %1 = arith.index_cast %0 : i32 to index
    %c0_1 = arith.constant 0 : index
    %c0_2 = arith.constant 0 : index
    %2 = vector.load %arg1[%1, %c0_1, %c0_2] : memref<50x1x32xf32, #tpu.memory_space<vmem>>, vector<1x1x32xf32>
    %3 = vector.shape_cast %2 : vector<1x1x32xf32> to vector<1x32xf32>
    %c1 = arith.constant 1 : index
    %c0_3 = arith.constant 0 : index
    %4 = memref.load %arg0[%c1, %c0_3] : memref<2x8xi32, #tpu.memory_space<smem>>
    %5 = arith.index_cast %4 : i32 to index
    %c0_4 = arith.constant 0 : index
    %c0_5 = arith.constant 0 : index
    %6 = vector.load %arg1[%5, %c0_4, %c0_5] : memref<50x1x32xf32, #tpu.memory_space<vmem>>, vector<1x1x32xf32>
    %7 = vector.shape_cast %6 : vector<1x1x32xf32> to vector<1x32xf32>
    %c0_6 = arith.constant 0 : index
    %c1_7 = arith.constant 1 : index
    %8 = memref.load %arg0[%c0_6, %c1_7] : memref<2x8xi32, #tpu.memory_space<smem>>
    %9 = arith.index_cast %8 : i32 to index
    %c0_8 = arith.constant 0 : index
    %c0_9 = arith.constant 0 : index
    %10 = vector.load %arg1[%9, %c0_8, %c0_9] : memref<50x1x32xf32, #tpu.memory_space<vmem>>, vector<1x1x32xf32>
    %11 = vector.shape_cast %10 : vector<1x1x32xf32> to vector<1x32xf32>
    %c1_10 = arith.constant 1 : index
    %c1_11 = arith.constant 1 : index
    %12 = memref.load %arg0[%c1_10, %c1_11] : memref<2x8xi32, #tpu.memory_space<smem>>
    %13 = arith.index_cast %12 : i32 to index
    %c0_12 = arith.constant 0 : index
    %c0_13 = arith.constant 0 : index
    %14 = vector.load %arg1[%13, %c0_12, %c0_13] : memref<50x1x32xf32, #tpu.memory_space<vmem>>, vector<1x1x32xf32>
    %15 = vector.shape_cast %14 : vector<1x1x32xf32> to vector<1x32xf32>
    %c0_14 = arith.constant 0 : index
    %c2 = arith.constant 2 : index
    %16 = memref.load %arg0[%c0_14, %c2] : memref<2x8xi32, #tpu.memory_space<smem>>
    %17 = arith.index_cast %16 : i32 to index
    %c0_15 = arith.constant 0 : index
    %c0_16 = arith.constant 0 : index
    %18 = vector.load %arg1[%17, %c0_15, %c0_16] : memref<50x1x32xf32, #tpu.memory_space<vmem>>, vector<1x1x32xf32>
    %19 = vector.shape_cast %18 : vector<1x1x32xf32> to vector<1x32xf32>
    %c1_17 = arith.constant 1 : index
    %c2_18 = arith.constant 2 : index
    %20 = memref.load %arg0[%c1_17, %c2_18] : memref<2x8xi32, #tpu.memory_space<smem>>
    %21 = arith.index_cast %20 : i32 to index
    %c0_19 = arith.constant 0 : index
    %c0_20 = arith.constant 0 : index
    %22 = vector.load %arg1[%21, %c0_19, %c0_20] : memref<50x1x32xf32, #tpu.memory_space<vmem>>, vector<1x1x32xf32>
    %23 = vector.shape_cast %22 : vector<1x1x32xf32> to vector<1x32xf32>
    %c0_21 = arith.constant 0 : index
    %c3 = arith.constant 3 : index
    %24 = memref.load %arg0[%c0_21, %c3] : memref<2x8xi32, #tpu.memory_space<smem>>
    %25 = arith.index_cast %24 : i32 to index
    %c0_22 = arith.constant 0 : index
    %c0_23 = arith.constant 0 : index
    %26 = vector.load %arg1[%25, %c0_22, %c0_23] : memref<50x1x32xf32, #tpu.memory_space<vmem>>, vector<1x1x32xf32>
    %27 = vector.shape_cast %26 : vector<1x1x32xf32> to vector<1x32xf32>
    %c1_24 = arith.constant 1 : index
    %c3_25 = arith.constant 3 : index
    %28 = memref.load %arg0[%c1_24, %c3_25] : memref<2x8xi32, #tpu.memory_space<smem>>
    %29 = arith.index_cast %28 : i32 to index
    %c0_26 = arith.constant 0 : index
    %c0_27 = arith.constant 0 : index
    %30 = vector.load %arg1[%29, %c0_26, %c0_27] : memref<50x1x32xf32, #tpu.memory_space<vmem>>, vector<1x1x32xf32>
    %31 = vector.shape_cast %30 : vector<1x1x32xf32> to vector<1x32xf32>
    %c0_28 = arith.constant 0 : index
    %c4 = arith.constant 4 : index
    %32 = memref.load %arg0[%c0_28, %c4] : memref<2x8xi32, #tpu.memory_space<smem>>
    %33 = arith.index_cast %32 : i32 to index
    %c0_29 = arith.constant 0 : index
    %c0_30 = arith.constant 0 : index
    %34 = vector.load %arg1[%33, %c0_29, %c0_30] : memref<50x1x32xf32, #tpu.memory_space<vmem>>, vector<1x1x32xf32>
    %35 = vector.shape_cast %34 : vector<1x1x32xf32> to vector<1x32xf32>
    %c1_31 = arith.constant 1 : index
    %c4_32 = arith.constant 4 : index
    %36 = memref.load %arg0[%c1_31, %c4_32] : memref<2x8xi32, #tpu.memory_space<smem>>
    %37 = arith.index_cast %36 : i32 to index
    %c0_33 = arith.constant 0 : index
    %c0_34 = arith.constant 0 : index
    %38 = vector.load %arg1[%37, %c0_33, %c0_34] : memref<50x1x32xf32, #tpu.memory_space<vmem>>, vector<1x1x32xf32>
    %39 = vector.shape_cast %38 : vector<1x1x32xf32> to vector<1x32xf32>
    %c0_35 = arith.constant 0 : index
    %c5 = arith.constant 5 : index
    %40 = memref.load %arg0[%c0_35, %c5] : memref<2x8xi32, #tpu.memory_space<smem>>
    %41 = arith.index_cast %40 : i32 to index
    %c0_36 = arith.constant 0 : index
    %c0_37 = arith.constant 0 : index
    %42 = vector.load %arg1[%41, %c0_36, %c0_37] : memref<50x1x32xf32, #tpu.memory_space<vmem>>, vector<1x1x32xf32>
    %43 = vector.shape_cast %42 : vector<1x1x32xf32> to vector<1x32xf32>
    %c1_38 = arith.constant 1 : index
    %c5_39 = arith.constant 5 : index
    %44 = memref.load %arg0[%c1_38, %c5_39] : memref<2x8xi32, #tpu.memory_space<smem>>
    %45 = arith.index_cast %44 : i32 to index
    %c0_40 = arith.constant 0 : index
    %c0_41 = arith.constant 0 : index
    %46 = vector.load %arg1[%45, %c0_40, %c0_41] : memref<50x1x32xf32, #tpu.memory_space<vmem>>, vector<1x1x32xf32>
    %47 = vector.shape_cast %46 : vector<1x1x32xf32> to vector<1x32xf32>
    %c0_42 = arith.constant 0 : index
    %c6 = arith.constant 6 : index
    %48 = memref.load %arg0[%c0_42, %c6] : memref<2x8xi32, #tpu.memory_space<smem>>
    %49 = arith.index_cast %48 : i32 to index
    %c0_43 = arith.constant 0 : index
    %c0_44 = arith.constant 0 : index
    %50 = vector.load %arg1[%49, %c0_43, %c0_44] : memref<50x1x32xf32, #tpu.memory_space<vmem>>, vector<1x1x32xf32>
    %51 = vector.shape_cast %50 : vector<1x1x32xf32> to vector<1x32xf32>
    %c1_45 = arith.constant 1 : index
    %c6_46 = arith.constant 6 : index
    %52 = memref.load %arg0[%c1_45, %c6_46] : memref<2x8xi32, #tpu.memory_space<smem>>
    %53 = arith.index_cast %52 : i32 to index
    %c0_47 = arith.constant 0 : index
    %c0_48 = arith.constant 0 : index
    %54 = vector.load %arg1[%53, %c0_47, %c0_48] : memref<50x1x32xf32, #tpu.memory_space<vmem>>, vector<1x1x32xf32>
    %55 = vector.shape_cast %54 : vector<1x1x32xf32> to vector<1x32xf32>
    %c0_49 = arith.constant 0 : index
    %c7 = arith.constant 7 : index
    %56 = memref.load %arg0[%c0_49, %c7] : memref<2x8xi32, #tpu.memory_space<smem>>
    %57 = arith.index_cast %56 : i32 to index
    %c0_50 = arith.constant 0 : index
    %c0_51 = arith.constant 0 : index
    %58 = vector.load %arg1[%57, %c0_50, %c0_51] : memref<50x1x32xf32, #tpu.memory_space<vmem>>, vector<1x1x32xf32>
    %59 = vector.shape_cast %58 : vector<1x1x32xf32> to vector<1x32xf32>
    %c1_52 = arith.constant 1 : index
    %c7_53 = arith.constant 7 : index
    %60 = memref.load %arg0[%c1_52, %c7_53] : memref<2x8xi32, #tpu.memory_space<smem>>
    %61 = arith.index_cast %60 : i32 to index
    %c0_54 = arith.constant 0 : index
    %c0_55 = arith.constant 0 : index
    %62 = vector.load %arg1[%61, %c0_54, %c0_55] : memref<50x1x32xf32, #tpu.memory_space<vmem>>, vector<1x1x32xf32>
    %63 = vector.shape_cast %62 : vector<1x1x32xf32> to vector<1x32xf32>
    %64 = tpu.concatenate %3, %7, %11, %15, %19, %23, %27, %31, %35, %39, %43, %47, %51, %55, %59, %63 in 0 : vector<1x32xf32>, vector<1x32xf32>, vector<1x32xf32>, vector<1x32xf32>, vector<1x32xf32>, vector<1x32xf32>, vector<1x32xf32>, vector<1x32xf32>, vector<1x32xf32>, vector<1x32xf32>, vector<1x32xf32>, vector<1x32xf32>, vector<1x32xf32>, vector<1x32xf32>, vector<1x32xf32>, vector<1x32xf32> -> vector<16x32xf32>
    %65 = arith.truncf %64 : vector<16x32xf32> to vector<16x32xbf16>
    %c0_56 = arith.constant 0 : index
    %c0_57 = arith.constant 0 : index
    %66 = vector.load %arg2[%c0_56, %c0_57] : memref<32x128xbf16, #tpu.memory_space<vmem>>, vector<32x128xbf16>
    %cst = arith.constant dense<0.000000e+00> : vector<16x128xf32>
    %67 = tpu.matmul %65, %66, %cst {dimension_numbers = #tpu.dot_dimension_numbers<[1], [0], [0], [1], [0, 0, 1, 1], [], []>} : vector<16x32xbf16>, vector<32x128xbf16>, vector<16x128xf32> -> vector<16x128xf32>
    %c0_58 = arith.constant 0 : index
    %c0_59 = arith.constant 0 : index
    %68 = vector.load %arg4[%c0_58, %c0_59] : memref<1x128xf32, #tpu.memory_space<vmem>>, vector<1x128xf32>
    %69 = vector.broadcast %68 : vector<1x128xf32> to vector<16x128xf32>
    %70 = arith.addf %67, %69 : vector<16x128xf32>
    %c0_60 = arith.constant 0 : index
    %c0_61 = arith.constant 0 : index
    %71 = vector.load %arg11[%c0_60, %c0_61] : memref<16x128xf32, #tpu.memory_space<vmem>>, vector<16x128xf32>
    tpu.vector_store %arg11[%c0_60, %c0_61], %70 {strides = array<i32>} : memref<16x128xf32, #tpu.memory_space<vmem>>, vector<16x128xf32>,
    %c0_62 = arith.constant 0 : index
    %c0_63 = arith.constant 0 : index
    %72 = vector.load %arg3[%c0_62, %c0_63] : memref<32x128xbf16, #tpu.memory_space<vmem>>, vector<32x128xbf16>
    %c0_64 = arith.constant 0 : index
    %c0_65 = arith.constant 0 : index
    %73 = vector.load %arg6[%c0_64, %c0_65] : memref<32x128xbf16, #tpu.memory_space<vmem>>, vector<32x128xbf16>
    %cst_66 = arith.constant 0.000000e+00 : f32
    %74 = vector.broadcast %cst_66 : f32 to vector<2x32xf32>
    %c0_i32 = arith.constant 0 : i32
    %c2_i32 = arith.constant 2 : i32
    %75 = arith.muli %c0_i32, %c2_i32 : i32
    %76 = tpu.assume_multiple %75, 2 : i32
    %77 = arith.index_cast %76 : i32 to index
    %c0_67 = arith.constant 0 : index
    %78 = vector.load %arg11[%77, %c0_67] : memref<16x128xf32, #tpu.memory_space<vmem>>, vector<2x128xf32>
    %79 = arith.truncf %74 : vector<2x32xf32> to vector<2x32xbf16>
    %cst_68 = arith.constant dense<0.000000e+00> : vector<2x128xf32>
    %80 = tpu.matmul %79, %72, %cst_68 {dimension_numbers = #tpu.dot_dimension_numbers<[1], [0], [0], [1], [0, 0, 1, 1], [], []>} : vector<2x32xbf16>, vector<32x128xbf16>, vector<2x128xf32> -> vector<2x128xf32>
    %81 = arith.addf %78, %80 : vector<2x128xf32>
    %82 = vector.extract_strided_slice %81 {offsets = [0, 0], sizes = [2, 96], strides = [1, 1]} : vector<2x128xf32> to vector<2x96xf32>
    %83 = arith.negf %82 : vector<2x96xf32>
    %84 = math.exp %83 : vector<2x96xf32>
    %cst_69 = arith.constant 1.000000e+00 : f32
    %85 = vector.broadcast %cst_69 : f32 to vector<2x96xf32>
    %86 = arith.addf %85, %84 : vector<2x96xf32>
    %87 = arith.divf %85, %86 : vector<2x96xf32>
    %88 = vector.extract_strided_slice %81 {offsets = [0, 96], sizes = [2, 32], strides = [1, 1]} : vector<2x128xf32> to vector<2x32xf32>
    %89 = math.tanh %88 : vector<2x32xf32>
    %90 = vector.extract_strided_slice %87 {offsets = [0, 0], sizes = [2, 32], strides = [1, 1]} : vector<2x96xf32> to vector<2x32xf32>
    %91 = vector.extract_strided_slice %87 {offsets = [0, 32], sizes = [2, 32], strides = [1, 1]} : vector<2x96xf32> to vector<2x32xf32>
    %92 = vector.extract_strided_slice %87 {offsets = [0, 64], sizes = [2, 32], strides = [1, 1]} : vector<2x96xf32> to vector<2x32xf32>
    %93 = arith.mulf %91, %74 : vector<2x32xf32>
    %94 = arith.mulf %90, %89 : vector<2x32xf32>
    %95 = arith.addf %93, %94 : vector<2x32xf32>
    %96 = math.tanh %95 : vector<2x32xf32>
    %97 = arith.mulf %92, %96 : vector<2x32xf32>
    %98 = arith.index_cast %76 : i32 to index
    %c0_70 = arith.constant 0 : index
    %99 = vector.load %arg12[%98, %c0_70] : memref<16x32xf32, #tpu.memory_space<vmem>>, vector<2x32xf32>
    tpu.vector_store %arg12[%98, %c0_70], %97 {strides = array<i32>} : memref<16x32xf32, #tpu.memory_space<vmem>>, vector<2x32xf32>,
    %c1_i32 = arith.constant 1 : i32
    %c2_i32_71 = arith.constant 2 : i32
    %100 = arith.muli %c1_i32, %c2_i32_71 : i32
    %101 = tpu.assume_multiple %100, 2 : i32
    %102 = arith.index_cast %101 : i32 to index
    %c0_72 = arith.constant 0 : index
    %103 = vector.load %arg11[%102, %c0_72] : memref<16x128xf32, #tpu.memory_space<vmem>>, vector<2x128xf32>
    %104 = arith.truncf %97 : vector<2x32xf32> to vector<2x32xbf16>
    %cst_73 = arith.constant dense<0.000000e+00> : vector<2x128xf32>
    %105 = tpu.matmul %104, %72, %cst_73 {dimension_numbers = #tpu.dot_dimension_numbers<[1], [0], [0], [1], [0, 0, 1, 1], [], []>} : vector<2x32xbf16>, vector<32x128xbf16>, vector<2x128xf32> -> vector<2x128xf32>
    %106 = arith.addf %103, %105 : vector<2x128xf32>
    %107 = vector.extract_strided_slice %106 {offsets = [0, 0], sizes = [2, 96], strides = [1, 1]} : vector<2x128xf32> to vector<2x96xf32>
    %108 = arith.negf %107 : vector<2x96xf32>
    %109 = math.exp %108 : vector<2x96xf32>
    %cst_74 = arith.constant 1.000000e+00 : f32
    %110 = vector.broadcast %cst_74 : f32 to vector<2x96xf32>
    %111 = arith.addf %110, %109 : vector<2x96xf32>
    %112 = arith.divf %110, %111 : vector<2x96xf32>
    %113 = vector.extract_strided_slice %106 {offsets = [0, 96], sizes = [2, 32], strides = [1, 1]} : vector<2x128xf32> to vector<2x32xf32>
    %114 = math.tanh %113 : vector<2x32xf32>
    %115 = vector.extract_strided_slice %112 {offsets = [0, 0], sizes = [2, 32], strides = [1, 1]} : vector<2x96xf32> to vector<2x32xf32>
    %116 = vector.extract_strided_slice %112 {offsets = [0, 32], sizes = [2, 32], strides = [1, 1]} : vector<2x96xf32> to vector<2x32xf32>
    %117 = vector.extract_strided_slice %112 {offsets = [0, 64], sizes = [2, 32], strides = [1, 1]} : vector<2x96xf32> to vector<2x32xf32>
    %118 = arith.mulf %116, %95 : vector<2x32xf32>
    %119 = arith.mulf %115, %114 : vector<2x32xf32>
    %120 = arith.addf %118, %119 : vector<2x32xf32>
    %121 = math.tanh %120 : vector<2x32xf32>
    %122 = arith.mulf %117, %121 : vector<2x32xf32>
    %123 = arith.index_cast %101 : i32 to index
    %c0_75 = arith.constant 0 : index
    %124 = vector.load %arg12[%123, %c0_75] : memref<16x32xf32, #tpu.memory_space<vmem>>, vector<2x32xf32>
    tpu.vector_store %arg12[%123, %c0_75], %122 {strides = array<i32>} : memref<16x32xf32, #tpu.memory_space<vmem>>, vector<2x32xf32>,
    %c2_i32_76 = arith.constant 2 : i32
    %c2_i32_77 = arith.constant 2 : i32
    %125 = arith.muli %c2_i32_76, %c2_i32_77 : i32
    %126 = tpu.assume_multiple %125, 2 : i32
    %127 = arith.index_cast %126 : i32 to index
    %c0_78 = arith.constant 0 : index
    %128 = vector.load %arg11[%127, %c0_78] : memref<16x128xf32, #tpu.memory_space<vmem>>, vector<2x128xf32>
    %129 = arith.truncf %122 : vector<2x32xf32> to vector<2x32xbf16>
    %cst_79 = arith.constant dense<0.000000e+00> : vector<2x128xf32>
    %130 = tpu.matmul %129, %72, %cst_79 {dimension_numbers = #tpu.dot_dimension_numbers<[1], [0], [0], [1], [0, 0, 1, 1], [], []>} : vector<2x32xbf16>, vector<32x128xbf16>, vector<2x128xf32> -> vector<2x128xf32>
    %131 = arith.addf %128, %130 : vector<2x128xf32>
    %132 = vector.extract_strided_slice %131 {offsets = [0, 0], sizes = [2, 96], strides = [1, 1]} : vector<2x128xf32> to vector<2x96xf32>
    %133 = arith.negf %132 : vector<2x96xf32>
    %134 = math.exp %133 : vector<2x96xf32>
    %cst_80 = arith.constant 1.000000e+00 : f32
    %135 = vector.broadcast %cst_80 : f32 to vector<2x96xf32>
    %136 = arith.addf %135, %134 : vector<2x96xf32>
    %137 = arith.divf %135, %136 : vector<2x96xf32>
    %138 = vector.extract_strided_slice %131 {offsets = [0, 96], sizes = [2, 32], strides = [1, 1]} : vector<2x128xf32> to vector<2x32xf32>
    %139 = math.tanh %138 : vector<2x32xf32>
    %140 = vector.extract_strided_slice %137 {offsets = [0, 0], sizes = [2, 32], strides = [1, 1]} : vector<2x96xf32> to vector<2x32xf32>
    %141 = vector.extract_strided_slice %137 {offsets = [0, 32], sizes = [2, 32], strides = [1, 1]} : vector<2x96xf32> to vector<2x32xf32>
    %142 = vector.extract_strided_slice %137 {offsets = [0, 64], sizes = [2, 32], strides = [1, 1]} : vector<2x96xf32> to vector<2x32xf32>
    %143 = arith.mulf %141, %120 : vector<2x32xf32>
    %144 = arith.mulf %140, %139 : vector<2x32xf32>
    %145 = arith.addf %143, %144 : vector<2x32xf32>
    %146 = math.tanh %145 : vector<2x32xf32>
    %147 = arith.mulf %142, %146 : vector<2x32xf32>
    %148 = arith.index_cast %126 : i32 to index
    %c0_81 = arith.constant 0 : index
    %149 = vector.load %arg12[%148, %c0_81] : memref<16x32xf32, #tpu.memory_space<vmem>>, vector<2x32xf32>
    tpu.vector_store %arg12[%148, %c0_81], %147 {strides = array<i32>} : memref<16x32xf32, #tpu.memory_space<vmem>>, vector<2x32xf32>,
    %c3_i32 = arith.constant 3 : i32
    %c2_i32_82 = arith.constant 2 : i32
    %150 = arith.muli %c3_i32, %c2_i32_82 : i32
    %151 = tpu.assume_multiple %150, 2 : i32
    %152 = arith.index_cast %151 : i32 to index
    %c0_83 = arith.constant 0 : index
    %153 = vector.load %arg11[%152, %c0_83] : memref<16x128xf32, #tpu.memory_space<vmem>>, vector<2x128xf32>
    %154 = arith.truncf %147 : vector<2x32xf32> to vector<2x32xbf16>
    %cst_84 = arith.constant dense<0.000000e+00> : vector<2x128xf32>
    %155 = tpu.matmul %154, %72, %cst_84 {dimension_numbers = #tpu.dot_dimension_numbers<[1], [0], [0], [1], [0, 0, 1, 1], [], []>} : vector<2x32xbf16>, vector<32x128xbf16>, vector<2x128xf32> -> vector<2x128xf32>
    %156 = arith.addf %153, %155 : vector<2x128xf32>
    %157 = vector.extract_strided_slice %156 {offsets = [0, 0], sizes = [2, 96], strides = [1, 1]} : vector<2x128xf32> to vector<2x96xf32>
    %158 = arith.negf %157 : vector<2x96xf32>
    %159 = math.exp %158 : vector<2x96xf32>
    %cst_85 = arith.constant 1.000000e+00 : f32
    %160 = vector.broadcast %cst_85 : f32 to vector<2x96xf32>
    %161 = arith.addf %160, %159 : vector<2x96xf32>
    %162 = arith.divf %160, %161 : vector<2x96xf32>
    %163 = vector.extract_strided_slice %156 {offsets = [0, 96], sizes = [2, 32], strides = [1, 1]} : vector<2x128xf32> to vector<2x32xf32>
    %164 = math.tanh %163 : vector<2x32xf32>
    %165 = vector.extract_strided_slice %162 {offsets = [0, 0], sizes = [2, 32], strides = [1, 1]} : vector<2x96xf32> to vector<2x32xf32>
    %166 = vector.extract_strided_slice %162 {offsets = [0, 32], sizes = [2, 32], strides = [1, 1]} : vector<2x96xf32> to vector<2x32xf32>
    %167 = vector.extract_strided_slice %162 {offsets = [0, 64], sizes = [2, 32], strides = [1, 1]} : vector<2x96xf32> to vector<2x32xf32>
    %168 = arith.mulf %166, %145 : vector<2x32xf32>
    %169 = arith.mulf %165, %164 : vector<2x32xf32>
    %170 = arith.addf %168, %169 : vector<2x32xf32>
    %171 = math.tanh %170 : vector<2x32xf32>
    %172 = arith.mulf %167, %171 : vector<2x32xf32>
    %173 = arith.index_cast %151 : i32 to index
    %c0_86 = arith.constant 0 : index
    %174 = vector.load %arg12[%173, %c0_86] : memref<16x32xf32, #tpu.memory_space<vmem>>, vector<2x32xf32>
    tpu.vector_store %arg12[%173, %c0_86], %172 {strides = array<i32>} : memref<16x32xf32, #tpu.memory_space<vmem>>, vector<2x32xf32>,
    %c4_i32 = arith.constant 4 : i32
    %c2_i32_87 = arith.constant 2 : i32
    %175 = arith.muli %c4_i32, %c2_i32_87 : i32
    %176 = tpu.assume_multiple %175, 2 : i32
    %177 = arith.index_cast %176 : i32 to index
    %c0_88 = arith.constant 0 : index
    %178 = vector.load %arg11[%177, %c0_88] : memref<16x128xf32, #tpu.memory_space<vmem>>, vector<2x128xf32>
    %179 = arith.truncf %172 : vector<2x32xf32> to vector<2x32xbf16>
    %cst_89 = arith.constant dense<0.000000e+00> : vector<2x128xf32>
    %180 = tpu.matmul %179, %72, %cst_89 {dimension_numbers = #tpu.dot_dimension_numbers<[1], [0], [0], [1], [0, 0, 1, 1], [], []>} : vector<2x32xbf16>, vector<32x128xbf16>, vector<2x128xf32> -> vector<2x128xf32>
    %181 = arith.addf %178, %180 : vector<2x128xf32>
    %182 = vector.extract_strided_slice %181 {offsets = [0, 0], sizes = [2, 96], strides = [1, 1]} : vector<2x128xf32> to vector<2x96xf32>
    %183 = arith.negf %182 : vector<2x96xf32>
    %184 = math.exp %183 : vector<2x96xf32>
    %cst_90 = arith.constant 1.000000e+00 : f32
    %185 = vector.broadcast %cst_90 : f32 to vector<2x96xf32>
    %186 = arith.addf %185, %184 : vector<2x96xf32>
    %187 = arith.divf %185, %186 : vector<2x96xf32>
    %188 = vector.extract_strided_slice %181 {offsets = [0, 96], sizes = [2, 32], strides = [1, 1]} : vector<2x128xf32> to vector<2x32xf32>
    %189 = math.tanh %188 : vector<2x32xf32>
    %190 = vector.extract_strided_slice %187 {offsets = [0, 0], sizes = [2, 32], strides = [1, 1]} : vector<2x96xf32> to vector<2x32xf32>
    %191 = vector.extract_strided_slice %187 {offsets = [0, 32], sizes = [2, 32], strides = [1, 1]} : vector<2x96xf32> to vector<2x32xf32>
    %192 = vector.extract_strided_slice %187 {offsets = [0, 64], sizes = [2, 32], strides = [1, 1]} : vector<2x96xf32> to vector<2x32xf32>
    %193 = arith.mulf %191, %170 : vector<2x32xf32>
    %194 = arith.mulf %190, %189 : vector<2x32xf32>
    %195 = arith.addf %193, %194 : vector<2x32xf32>
    %196 = math.tanh %195 : vector<2x32xf32>
    %197 = arith.mulf %192, %196 : vector<2x32xf32>
    %198 = arith.index_cast %176 : i32 to index
    %c0_91 = arith.constant 0 : index
    %199 = vector.load %arg12[%198, %c0_91] : memref<16x32xf32, #tpu.memory_space<vmem>>, vector<2x32xf32>
    tpu.vector_store %arg12[%198, %c0_91], %197 {strides = array<i32>} : memref<16x32xf32, #tpu.memory_space<vmem>>, vector<2x32xf32>,
    %c5_i32 = arith.constant 5 : i32
    %c2_i32_92 = arith.constant 2 : i32
    %200 = arith.muli %c5_i32, %c2_i32_92 : i32
    %201 = tpu.assume_multiple %200, 2 : i32
    %202 = arith.index_cast %201 : i32 to index
    %c0_93 = arith.constant 0 : index
    %203 = vector.load %arg11[%202, %c0_93] : memref<16x128xf32, #tpu.memory_space<vmem>>, vector<2x128xf32>
    %204 = arith.truncf %197 : vector<2x32xf32> to vector<2x32xbf16>
    %cst_94 = arith.constant dense<0.000000e+00> : vector<2x128xf32>
    %205 = tpu.matmul %204, %72, %cst_94 {dimension_numbers = #tpu.dot_dimension_numbers<[1], [0], [0], [1], [0, 0, 1, 1], [], []>} : vector<2x32xbf16>, vector<32x128xbf16>, vector<2x128xf32> -> vector<2x128xf32>
    %206 = arith.addf %203, %205 : vector<2x128xf32>
    %207 = vector.extract_strided_slice %206 {offsets = [0, 0], sizes = [2, 96], strides = [1, 1]} : vector<2x128xf32> to vector<2x96xf32>
    %208 = arith.negf %207 : vector<2x96xf32>
    %209 = math.exp %208 : vector<2x96xf32>
    %cst_95 = arith.constant 1.000000e+00 : f32
    %210 = vector.broadcast %cst_95 : f32 to vector<2x96xf32>
    %211 = arith.addf %210, %209 : vector<2x96xf32>
    %212 = arith.divf %210, %211 : vector<2x96xf32>
    %213 = vector.extract_strided_slice %206 {offsets = [0, 96], sizes = [2, 32], strides = [1, 1]} : vector<2x128xf32> to vector<2x32xf32>
    %214 = math.tanh %213 : vector<2x32xf32>
    %215 = vector.extract_strided_slice %212 {offsets = [0, 0], sizes = [2, 32], strides = [1, 1]} : vector<2x96xf32> to vector<2x32xf32>
    %216 = vector.extract_strided_slice %212 {offsets = [0, 32], sizes = [2, 32], strides = [1, 1]} : vector<2x96xf32> to vector<2x32xf32>
    %217 = vector.extract_strided_slice %212 {offsets = [0, 64], sizes = [2, 32], strides = [1, 1]} : vector<2x96xf32> to vector<2x32xf32>
    %218 = arith.mulf %216, %195 : vector<2x32xf32>
    %219 = arith.mulf %215, %214 : vector<2x32xf32>
    %220 = arith.addf %218, %219 : vector<2x32xf32>
    %221 = math.tanh %220 : vector<2x32xf32>
    %222 = arith.mulf %217, %221 : vector<2x32xf32>
    %223 = arith.index_cast %201 : i32 to index
    %c0_96 = arith.constant 0 : index
    %224 = vector.load %arg12[%223, %c0_96] : memref<16x32xf32, #tpu.memory_space<vmem>>, vector<2x32xf32>
    tpu.vector_store %arg12[%223, %c0_96], %222 {strides = array<i32>} : memref<16x32xf32, #tpu.memory_space<vmem>>, vector<2x32xf32>,
    %c6_i32 = arith.constant 6 : i32
    %c2_i32_97 = arith.constant 2 : i32
    %225 = arith.muli %c6_i32, %c2_i32_97 : i32
    %226 = tpu.assume_multiple %225, 2 : i32
    %227 = arith.index_cast %226 : i32 to index
    %c0_98 = arith.constant 0 : index
    %228 = vector.load %arg11[%227, %c0_98] : memref<16x128xf32, #tpu.memory_space<vmem>>, vector<2x128xf32>
    %229 = arith.truncf %222 : vector<2x32xf32> to vector<2x32xbf16>
    %cst_99 = arith.constant dense<0.000000e+00> : vector<2x128xf32>
    %230 = tpu.matmul %229, %72, %cst_99 {dimension_numbers = #tpu.dot_dimension_numbers<[1], [0], [0], [1], [0, 0, 1, 1], [], []>} : vector<2x32xbf16>, vector<32x128xbf16>, vector<2x128xf32> -> vector<2x128xf32>
    %231 = arith.addf %228, %230 : vector<2x128xf32>
    %232 = vector.extract_strided_slice %231 {offsets = [0, 0], sizes = [2, 96], strides = [1, 1]} : vector<2x128xf32> to vector<2x96xf32>
    %233 = arith.negf %232 : vector<2x96xf32>
    %234 = math.exp %233 : vector<2x96xf32>
    %cst_100 = arith.constant 1.000000e+00 : f32
    %235 = vector.broadcast %cst_100 : f32 to vector<2x96xf32>
    %236 = arith.addf %235, %234 : vector<2x96xf32>
    %237 = arith.divf %235, %236 : vector<2x96xf32>
    %238 = vector.extract_strided_slice %231 {offsets = [0, 96], sizes = [2, 32], strides = [1, 1]} : vector<2x128xf32> to vector<2x32xf32>
    %239 = math.tanh %238 : vector<2x32xf32>
    %240 = vector.extract_strided_slice %237 {offsets = [0, 0], sizes = [2, 32], strides = [1, 1]} : vector<2x96xf32> to vector<2x32xf32>
    %241 = vector.extract_strided_slice %237 {offsets = [0, 32], sizes = [2, 32], strides = [1, 1]} : vector<2x96xf32> to vector<2x32xf32>
    %242 = vector.extract_strided_slice %237 {offsets = [0, 64], sizes = [2, 32], strides = [1, 1]} : vector<2x96xf32> to vector<2x32xf32>
    %243 = arith.mulf %241, %220 : vector<2x32xf32>
    %244 = arith.mulf %240, %239 : vector<2x32xf32>
    %245 = arith.addf %243, %244 : vector<2x32xf32>
    %246 = math.tanh %245 : vector<2x32xf32>
    %247 = arith.mulf %242, %246 : vector<2x32xf32>
    %248 = arith.index_cast %226 : i32 to index
    %c0_101 = arith.constant 0 : index
    %249 = vector.load %arg12[%248, %c0_101] : memref<16x32xf32, #tpu.memory_space<vmem>>, vector<2x32xf32>
    tpu.vector_store %arg12[%248, %c0_101], %247 {strides = array<i32>} : memref<16x32xf32, #tpu.memory_space<vmem>>, vector<2x32xf32>,
    %c7_i32 = arith.constant 7 : i32
    %c2_i32_102 = arith.constant 2 : i32
    %250 = arith.muli %c7_i32, %c2_i32_102 : i32
    %251 = tpu.assume_multiple %250, 2 : i32
    %252 = arith.index_cast %251 : i32 to index
    %c0_103 = arith.constant 0 : index
    %253 = vector.load %arg11[%252, %c0_103] : memref<16x128xf32, #tpu.memory_space<vmem>>, vector<2x128xf32>
    %254 = arith.truncf %247 : vector<2x32xf32> to vector<2x32xbf16>
    %cst_104 = arith.constant dense<0.000000e+00> : vector<2x128xf32>
    %255 = tpu.matmul %254, %72, %cst_104 {dimension_numbers = #tpu.dot_dimension_numbers<[1], [0], [0], [1], [0, 0, 1, 1], [], []>} : vector<2x32xbf16>, vector<32x128xbf16>, vector<2x128xf32> -> vector<2x128xf32>
    %256 = arith.addf %253, %255 : vector<2x128xf32>
    %257 = vector.extract_strided_slice %256 {offsets = [0, 0], sizes = [2, 96], strides = [1, 1]} : vector<2x128xf32> to vector<2x96xf32>
    %258 = arith.negf %257 : vector<2x96xf32>
    %259 = math.exp %258 : vector<2x96xf32>
    %cst_105 = arith.constant 1.000000e+00 : f32
    %260 = vector.broadcast %cst_105 : f32 to vector<2x96xf32>
    %261 = arith.addf %260, %259 : vector<2x96xf32>
    %262 = arith.divf %260, %261 : vector<2x96xf32>
    %263 = vector.extract_strided_slice %256 {offsets = [0, 96], sizes = [2, 32], strides = [1, 1]} : vector<2x128xf32> to vector<2x32xf32>
    %264 = math.tanh %263 : vector<2x32xf32>
    %265 = vector.extract_strided_slice %262 {offsets = [0, 0], sizes = [2, 32], strides = [1, 1]} : vector<2x96xf32> to vector<2x32xf32>
    %266 = vector.extract_strided_slice %262 {offsets = [0, 32], sizes = [2, 32], strides = [1, 1]} : vector<2x96xf32> to vector<2x32xf32>
    %267 = vector.extract_strided_slice %262 {offsets = [0, 64], sizes = [2, 32], strides = [1, 1]} : vector<2x96xf32> to vector<2x32xf32>
    %268 = arith.mulf %266, %245 : vector<2x32xf32>
    %269 = arith.mulf %265, %264 : vector<2x32xf32>
    %270 = arith.addf %268, %269 : vector<2x32xf32>
    %271 = math.tanh %270 : vector<2x32xf32>
    %272 = arith.mulf %267, %271 : vector<2x32xf32>
    %273 = arith.index_cast %251 : i32 to index
    %c0_106 = arith.constant 0 : index
    %274 = vector.load %arg12[%273, %c0_106] : memref<16x32xf32, #tpu.memory_space<vmem>>, vector<2x32xf32>
    tpu.vector_store %arg12[%273, %c0_106], %272 {strides = array<i32>} : memref<16x32xf32, #tpu.memory_space<vmem>>, vector<2x32xf32>,
    %c8_i32 = arith.constant 8 : i32
    %c0_107 = arith.constant 0 : index
    %c0_108 = arith.constant 0 : index
    %275 = vector.load %arg12[%c0_107, %c0_108] : memref<16x32xf32, #tpu.memory_space<vmem>>, vector<16x32xf32>
    %276 = arith.truncf %275 : vector<16x32xf32> to vector<16x32xbf16>
    %c0_109 = arith.constant 0 : index
    %c0_110 = arith.constant 0 : index
    %277 = vector.load %arg5[%c0_109, %c0_110] : memref<32x128xbf16, #tpu.memory_space<vmem>>, vector<32x128xbf16>
    %cst_111 = arith.constant dense<0.000000e+00> : vector<16x128xf32>
    %278 = tpu.matmul %276, %277, %cst_111 {dimension_numbers = #tpu.dot_dimension_numbers<[1], [0], [0], [1], [0, 0, 1, 1], [], []>} : vector<16x32xbf16>, vector<32x128xbf16>, vector<16x128xf32> -> vector<16x128xf32>
    %c0_112 = arith.constant 0 : index
    %c0_113 = arith.constant 0 : index
    %279 = vector.load %arg7[%c0_112, %c0_113] : memref<1x128xf32, #tpu.memory_space<vmem>>, vector<1x128xf32>
    %280 = vector.broadcast %279 : vector<1x128xf32> to vector<16x128xf32>
    %281 = arith.addf %278, %280 : vector<16x128xf32>
    %c0_114 = arith.constant 0 : index
    %c0_115 = arith.constant 0 : index
    %282 = vector.load %arg11[%c0_114, %c0_115] : memref<16x128xf32, #tpu.memory_space<vmem>>, vector<16x128xf32>
    tpu.vector_store %arg11[%c0_114, %c0_115], %281 {strides = array<i32>} : memref<16x128xf32, #tpu.memory_space<vmem>>, vector<16x128xf32>,
    %c0_i32_116 = arith.constant 0 : i32
    %c2_i32_117 = arith.constant 2 : i32
    %283 = arith.muli %c0_i32_116, %c2_i32_117 : i32
    %284 = tpu.assume_multiple %283, 2 : i32
    %285 = arith.index_cast %284 : i32 to index
    %c0_118 = arith.constant 0 : index
    %286 = vector.load %arg11[%285, %c0_118] : memref<16x128xf32, #tpu.memory_space<vmem>>, vector<2x128xf32>
    %287 = arith.truncf %74 : vector<2x32xf32> to vector<2x32xbf16>
    %cst_119 = arith.constant dense<0.000000e+00> : vector<2x128xf32>
    %288 = tpu.matmul %287, %73, %cst_119 {dimension_numbers = #tpu.dot_dimension_numbers<[1], [0], [0], [1], [0, 0, 1, 1], [], []>} : vector<2x32xbf16>, vector<32x128xbf16>, vector<2x128xf32> -> vector<2x128xf32>
    %289 = arith.addf %286, %288 : vector<2x128xf32>
    %290 = vector.extract_strided_slice %289 {offsets = [0, 0], sizes = [2, 96], strides = [1, 1]} : vector<2x128xf32> to vector<2x96xf32>
    %291 = arith.negf %290 : vector<2x96xf32>
    %292 = math.exp %291 : vector<2x96xf32>
    %cst_120 = arith.constant 1.000000e+00 : f32
    %293 = vector.broadcast %cst_120 : f32 to vector<2x96xf32>
    %294 = arith.addf %293, %292 : vector<2x96xf32>
    %295 = arith.divf %293, %294 : vector<2x96xf32>
    %296 = vector.extract_strided_slice %289 {offsets = [0, 96], sizes = [2, 32], strides = [1, 1]} : vector<2x128xf32> to vector<2x32xf32>
    %297 = math.tanh %296 : vector<2x32xf32>
    %298 = vector.extract_strided_slice %295 {offsets = [0, 0], sizes = [2, 32], strides = [1, 1]} : vector<2x96xf32> to vector<2x32xf32>
    %299 = vector.extract_strided_slice %295 {offsets = [0, 32], sizes = [2, 32], strides = [1, 1]} : vector<2x96xf32> to vector<2x32xf32>
    %300 = vector.extract_strided_slice %295 {offsets = [0, 64], sizes = [2, 32], strides = [1, 1]} : vector<2x96xf32> to vector<2x32xf32>
    %301 = arith.mulf %299, %74 : vector<2x32xf32>
    %302 = arith.mulf %298, %297 : vector<2x32xf32>
    %303 = arith.addf %301, %302 : vector<2x32xf32>
    %304 = math.tanh %303 : vector<2x32xf32>
    %305 = arith.mulf %300, %304 : vector<2x32xf32>
    %306 = arith.index_cast %284 : i32 to index
    %c0_121 = arith.constant 0 : index
    %307 = vector.load %arg12[%306, %c0_121] : memref<16x32xf32, #tpu.memory_space<vmem>>, vector<2x32xf32>
    tpu.vector_store %arg12[%306, %c0_121], %305 {strides = array<i32>} : memref<16x32xf32, #tpu.memory_space<vmem>>, vector<2x32xf32>,
    %c1_i32_122 = arith.constant 1 : i32
    %c2_i32_123 = arith.constant 2 : i32
    %308 = arith.muli %c1_i32_122, %c2_i32_123 : i32
    %309 = tpu.assume_multiple %308, 2 : i32
    %310 = arith.index_cast %309 : i32 to index
    %c0_124 = arith.constant 0 : index
    %311 = vector.load %arg11[%310, %c0_124] : memref<16x128xf32, #tpu.memory_space<vmem>>, vector<2x128xf32>
    %312 = arith.truncf %305 : vector<2x32xf32> to vector<2x32xbf16>
    %cst_125 = arith.constant dense<0.000000e+00> : vector<2x128xf32>
    %313 = tpu.matmul %312, %73, %cst_125 {dimension_numbers = #tpu.dot_dimension_numbers<[1], [0], [0], [1], [0, 0, 1, 1], [], []>} : vector<2x32xbf16>, vector<32x128xbf16>, vector<2x128xf32> -> vector<2x128xf32>
    %314 = arith.addf %311, %313 : vector<2x128xf32>
    %315 = vector.extract_strided_slice %314 {offsets = [0, 0], sizes = [2, 96], strides = [1, 1]} : vector<2x128xf32> to vector<2x96xf32>
    %316 = arith.negf %315 : vector<2x96xf32>
    %317 = math.exp %316 : vector<2x96xf32>
    %cst_126 = arith.constant 1.000000e+00 : f32
    %318 = vector.broadcast %cst_126 : f32 to vector<2x96xf32>
    %319 = arith.addf %318, %317 : vector<2x96xf32>
    %320 = arith.divf %318, %319 : vector<2x96xf32>
    %321 = vector.extract_strided_slice %314 {offsets = [0, 96], sizes = [2, 32], strides = [1, 1]} : vector<2x128xf32> to vector<2x32xf32>
    %322 = math.tanh %321 : vector<2x32xf32>
    %323 = vector.extract_strided_slice %320 {offsets = [0, 0], sizes = [2, 32], strides = [1, 1]} : vector<2x96xf32> to vector<2x32xf32>
    %324 = vector.extract_strided_slice %320 {offsets = [0, 32], sizes = [2, 32], strides = [1, 1]} : vector<2x96xf32> to vector<2x32xf32>
    %325 = vector.extract_strided_slice %320 {offsets = [0, 64], sizes = [2, 32], strides = [1, 1]} : vector<2x96xf32> to vector<2x32xf32>
    %326 = arith.mulf %324, %303 : vector<2x32xf32>
    %327 = arith.mulf %323, %322 : vector<2x32xf32>
    %328 = arith.addf %326, %327 : vector<2x32xf32>
    %329 = math.tanh %328 : vector<2x32xf32>
    %330 = arith.mulf %325, %329 : vector<2x32xf32>
    %331 = arith.index_cast %309 : i32 to index
    %c0_127 = arith.constant 0 : index
    %332 = vector.load %arg12[%331, %c0_127] : memref<16x32xf32, #tpu.memory_space<vmem>>, vector<2x32xf32>
    tpu.vector_store %arg12[%331, %c0_127], %330 {strides = array<i32>} : memref<16x32xf32, #tpu.memory_space<vmem>>, vector<2x32xf32>,
    %c2_i32_128 = arith.constant 2 : i32
    %c2_i32_129 = arith.constant 2 : i32
    %333 = arith.muli %c2_i32_128, %c2_i32_129 : i32
    %334 = tpu.assume_multiple %333, 2 : i32
    %335 = arith.index_cast %334 : i32 to index
    %c0_130 = arith.constant 0 : index
    %336 = vector.load %arg11[%335, %c0_130] : memref<16x128xf32, #tpu.memory_space<vmem>>, vector<2x128xf32>
    %337 = arith.truncf %330 : vector<2x32xf32> to vector<2x32xbf16>
    %cst_131 = arith.constant dense<0.000000e+00> : vector<2x128xf32>
    %338 = tpu.matmul %337, %73, %cst_131 {dimension_numbers = #tpu.dot_dimension_numbers<[1], [0], [0], [1], [0, 0, 1, 1], [], []>} : vector<2x32xbf16>, vector<32x128xbf16>, vector<2x128xf32> -> vector<2x128xf32>
    %339 = arith.addf %336, %338 : vector<2x128xf32>
    %340 = vector.extract_strided_slice %339 {offsets = [0, 0], sizes = [2, 96], strides = [1, 1]} : vector<2x128xf32> to vector<2x96xf32>
    %341 = arith.negf %340 : vector<2x96xf32>
    %342 = math.exp %341 : vector<2x96xf32>
    %cst_132 = arith.constant 1.000000e+00 : f32
    %343 = vector.broadcast %cst_132 : f32 to vector<2x96xf32>
    %344 = arith.addf %343, %342 : vector<2x96xf32>
    %345 = arith.divf %343, %344 : vector<2x96xf32>
    %346 = vector.extract_strided_slice %339 {offsets = [0, 96], sizes = [2, 32], strides = [1, 1]} : vector<2x128xf32> to vector<2x32xf32>
    %347 = math.tanh %346 : vector<2x32xf32>
    %348 = vector.extract_strided_slice %345 {offsets = [0, 0], sizes = [2, 32], strides = [1, 1]} : vector<2x96xf32> to vector<2x32xf32>
    %349 = vector.extract_strided_slice %345 {offsets = [0, 32], sizes = [2, 32], strides = [1, 1]} : vector<2x96xf32> to vector<2x32xf32>
    %350 = vector.extract_strided_slice %345 {offsets = [0, 64], sizes = [2, 32], strides = [1, 1]} : vector<2x96xf32> to vector<2x32xf32>
    %351 = arith.mulf %349, %328 : vector<2x32xf32>
    %352 = arith.mulf %348, %347 : vector<2x32xf32>
    %353 = arith.addf %351, %352 : vector<2x32xf32>
    %354 = math.tanh %353 : vector<2x32xf32>
    %355 = arith.mulf %350, %354 : vector<2x32xf32>
    %356 = arith.index_cast %334 : i32 to index
    %c0_133 = arith.constant 0 : index
    %357 = vector.load %arg12[%356, %c0_133] : memref<16x32xf32, #tpu.memory_space<vmem>>, vector<2x32xf32>
    tpu.vector_store %arg12[%356, %c0_133], %355 {strides = array<i32>} : memref<16x32xf32, #tpu.memory_space<vmem>>, vector<2x32xf32>,
    %c3_i32_134 = arith.constant 3 : i32
    %c2_i32_135 = arith.constant 2 : i32
    %358 = arith.muli %c3_i32_134, %c2_i32_135 : i32
    %359 = tpu.assume_multiple %358, 2 : i32
    %360 = arith.index_cast %359 : i32 to index
    %c0_136 = arith.constant 0 : index
    %361 = vector.load %arg11[%360, %c0_136] : memref<16x128xf32, #tpu.memory_space<vmem>>, vector<2x128xf32>
    %362 = arith.truncf %355 : vector<2x32xf32> to vector<2x32xbf16>
    %cst_137 = arith.constant dense<0.000000e+00> : vector<2x128xf32>
    %363 = tpu.matmul %362, %73, %cst_137 {dimension_numbers = #tpu.dot_dimension_numbers<[1], [0], [0], [1], [0, 0, 1, 1], [], []>} : vector<2x32xbf16>, vector<32x128xbf16>, vector<2x128xf32> -> vector<2x128xf32>
    %364 = arith.addf %361, %363 : vector<2x128xf32>
    %365 = vector.extract_strided_slice %364 {offsets = [0, 0], sizes = [2, 96], strides = [1, 1]} : vector<2x128xf32> to vector<2x96xf32>
    %366 = arith.negf %365 : vector<2x96xf32>
    %367 = math.exp %366 : vector<2x96xf32>
    %cst_138 = arith.constant 1.000000e+00 : f32
    %368 = vector.broadcast %cst_138 : f32 to vector<2x96xf32>
    %369 = arith.addf %368, %367 : vector<2x96xf32>
    %370 = arith.divf %368, %369 : vector<2x96xf32>
    %371 = vector.extract_strided_slice %364 {offsets = [0, 96], sizes = [2, 32], strides = [1, 1]} : vector<2x128xf32> to vector<2x32xf32>
    %372 = math.tanh %371 : vector<2x32xf32>
    %373 = vector.extract_strided_slice %370 {offsets = [0, 0], sizes = [2, 32], strides = [1, 1]} : vector<2x96xf32> to vector<2x32xf32>
    %374 = vector.extract_strided_slice %370 {offsets = [0, 32], sizes = [2, 32], strides = [1, 1]} : vector<2x96xf32> to vector<2x32xf32>
    %375 = vector.extract_strided_slice %370 {offsets = [0, 64], sizes = [2, 32], strides = [1, 1]} : vector<2x96xf32> to vector<2x32xf32>
    %376 = arith.mulf %374, %353 : vector<2x32xf32>
    %377 = arith.mulf %373, %372 : vector<2x32xf32>
    %378 = arith.addf %376, %377 : vector<2x32xf32>
    %379 = math.tanh %378 : vector<2x32xf32>
    %380 = arith.mulf %375, %379 : vector<2x32xf32>
    %381 = arith.index_cast %359 : i32 to index
    %c0_139 = arith.constant 0 : index
    %382 = vector.load %arg12[%381, %c0_139] : memref<16x32xf32, #tpu.memory_space<vmem>>, vector<2x32xf32>
    tpu.vector_store %arg12[%381, %c0_139], %380 {strides = array<i32>} : memref<16x32xf32, #tpu.memory_space<vmem>>, vector<2x32xf32>,
    %c4_i32_140 = arith.constant 4 : i32
    %c2_i32_141 = arith.constant 2 : i32
    %383 = arith.muli %c4_i32_140, %c2_i32_141 : i32
    %384 = tpu.assume_multiple %383, 2 : i32
    %385 = arith.index_cast %384 : i32 to index
    %c0_142 = arith.constant 0 : index
    %386 = vector.load %arg11[%385, %c0_142] : memref<16x128xf32, #tpu.memory_space<vmem>>, vector<2x128xf32>
    %387 = arith.truncf %380 : vector<2x32xf32> to vector<2x32xbf16>
    %cst_143 = arith.constant dense<0.000000e+00> : vector<2x128xf32>
    %388 = tpu.matmul %387, %73, %cst_143 {dimension_numbers = #tpu.dot_dimension_numbers<[1], [0], [0], [1], [0, 0, 1, 1], [], []>} : vector<2x32xbf16>, vector<32x128xbf16>, vector<2x128xf32> -> vector<2x128xf32>
    %389 = arith.addf %386, %388 : vector<2x128xf32>
    %390 = vector.extract_strided_slice %389 {offsets = [0, 0], sizes = [2, 96], strides = [1, 1]} : vector<2x128xf32> to vector<2x96xf32>
    %391 = arith.negf %390 : vector<2x96xf32>
    %392 = math.exp %391 : vector<2x96xf32>
    %cst_144 = arith.constant 1.000000e+00 : f32
    %393 = vector.broadcast %cst_144 : f32 to vector<2x96xf32>
    %394 = arith.addf %393, %392 : vector<2x96xf32>
    %395 = arith.divf %393, %394 : vector<2x96xf32>
    %396 = vector.extract_strided_slice %389 {offsets = [0, 96], sizes = [2, 32], strides = [1, 1]} : vector<2x128xf32> to vector<2x32xf32>
    %397 = math.tanh %396 : vector<2x32xf32>
    %398 = vector.extract_strided_slice %395 {offsets = [0, 0], sizes = [2, 32], strides = [1, 1]} : vector<2x96xf32> to vector<2x32xf32>
    %399 = vector.extract_strided_slice %395 {offsets = [0, 32], sizes = [2, 32], strides = [1, 1]} : vector<2x96xf32> to vector<2x32xf32>
    %400 = vector.extract_strided_slice %395 {offsets = [0, 64], sizes = [2, 32], strides = [1, 1]} : vector<2x96xf32> to vector<2x32xf32>
    %401 = arith.mulf %399, %378 : vector<2x32xf32>
    %402 = arith.mulf %398, %397 : vector<2x32xf32>
    %403 = arith.addf %401, %402 : vector<2x32xf32>
    %404 = math.tanh %403 : vector<2x32xf32>
    %405 = arith.mulf %400, %404 : vector<2x32xf32>
    %406 = arith.index_cast %384 : i32 to index
    %c0_145 = arith.constant 0 : index
    %407 = vector.load %arg12[%406, %c0_145] : memref<16x32xf32, #tpu.memory_space<vmem>>, vector<2x32xf32>
    tpu.vector_store %arg12[%406, %c0_145], %405 {strides = array<i32>} : memref<16x32xf32, #tpu.memory_space<vmem>>, vector<2x32xf32>,
    %c5_i32_146 = arith.constant 5 : i32
    %c2_i32_147 = arith.constant 2 : i32
    %408 = arith.muli %c5_i32_146, %c2_i32_147 : i32
    %409 = tpu.assume_multiple %408, 2 : i32
    %410 = arith.index_cast %409 : i32 to index
    %c0_148 = arith.constant 0 : index
    %411 = vector.load %arg11[%410, %c0_148] : memref<16x128xf32, #tpu.memory_space<vmem>>, vector<2x128xf32>
    %412 = arith.truncf %405 : vector<2x32xf32> to vector<2x32xbf16>
    %cst_149 = arith.constant dense<0.000000e+00> : vector<2x128xf32>
    %413 = tpu.matmul %412, %73, %cst_149 {dimension_numbers = #tpu.dot_dimension_numbers<[1], [0], [0], [1], [0, 0, 1, 1], [], []>} : vector<2x32xbf16>, vector<32x128xbf16>, vector<2x128xf32> -> vector<2x128xf32>
    %414 = arith.addf %411, %413 : vector<2x128xf32>
    %415 = vector.extract_strided_slice %414 {offsets = [0, 0], sizes = [2, 96], strides = [1, 1]} : vector<2x128xf32> to vector<2x96xf32>
    %416 = arith.negf %415 : vector<2x96xf32>
    %417 = math.exp %416 : vector<2x96xf32>
    %cst_150 = arith.constant 1.000000e+00 : f32
    %418 = vector.broadcast %cst_150 : f32 to vector<2x96xf32>
    %419 = arith.addf %418, %417 : vector<2x96xf32>
    %420 = arith.divf %418, %419 : vector<2x96xf32>
    %421 = vector.extract_strided_slice %414 {offsets = [0, 96], sizes = [2, 32], strides = [1, 1]} : vector<2x128xf32> to vector<2x32xf32>
    %422 = math.tanh %421 : vector<2x32xf32>
    %423 = vector.extract_strided_slice %420 {offsets = [0, 0], sizes = [2, 32], strides = [1, 1]} : vector<2x96xf32> to vector<2x32xf32>
    %424 = vector.extract_strided_slice %420 {offsets = [0, 32], sizes = [2, 32], strides = [1, 1]} : vector<2x96xf32> to vector<2x32xf32>
    %425 = vector.extract_strided_slice %420 {offsets = [0, 64], sizes = [2, 32], strides = [1, 1]} : vector<2x96xf32> to vector<2x32xf32>
    %426 = arith.mulf %424, %403 : vector<2x32xf32>
    %427 = arith.mulf %423, %422 : vector<2x32xf32>
    %428 = arith.addf %426, %427 : vector<2x32xf32>
    %429 = math.tanh %428 : vector<2x32xf32>
    %430 = arith.mulf %425, %429 : vector<2x32xf32>
    %431 = arith.index_cast %409 : i32 to index
    %c0_151 = arith.constant 0 : index
    %432 = vector.load %arg12[%431, %c0_151] : memref<16x32xf32, #tpu.memory_space<vmem>>, vector<2x32xf32>
    tpu.vector_store %arg12[%431, %c0_151], %430 {strides = array<i32>} : memref<16x32xf32, #tpu.memory_space<vmem>>, vector<2x32xf32>,
    %c6_i32_152 = arith.constant 6 : i32
    %c2_i32_153 = arith.constant 2 : i32
    %433 = arith.muli %c6_i32_152, %c2_i32_153 : i32
    %434 = tpu.assume_multiple %433, 2 : i32
    %435 = arith.index_cast %434 : i32 to index
    %c0_154 = arith.constant 0 : index
    %436 = vector.load %arg11[%435, %c0_154] : memref<16x128xf32, #tpu.memory_space<vmem>>, vector<2x128xf32>
    %437 = arith.truncf %430 : vector<2x32xf32> to vector<2x32xbf16>
    %cst_155 = arith.constant dense<0.000000e+00> : vector<2x128xf32>
    %438 = tpu.matmul %437, %73, %cst_155 {dimension_numbers = #tpu.dot_dimension_numbers<[1], [0], [0], [1], [0, 0, 1, 1], [], []>} : vector<2x32xbf16>, vector<32x128xbf16>, vector<2x128xf32> -> vector<2x128xf32>
    %439 = arith.addf %436, %438 : vector<2x128xf32>
    %440 = vector.extract_strided_slice %439 {offsets = [0, 0], sizes = [2, 96], strides = [1, 1]} : vector<2x128xf32> to vector<2x96xf32>
    %441 = arith.negf %440 : vector<2x96xf32>
    %442 = math.exp %441 : vector<2x96xf32>
    %cst_156 = arith.constant 1.000000e+00 : f32
    %443 = vector.broadcast %cst_156 : f32 to vector<2x96xf32>
    %444 = arith.addf %443, %442 : vector<2x96xf32>
    %445 = arith.divf %443, %444 : vector<2x96xf32>
    %446 = vector.extract_strided_slice %439 {offsets = [0, 96], sizes = [2, 32], strides = [1, 1]} : vector<2x128xf32> to vector<2x32xf32>
    %447 = math.tanh %446 : vector<2x32xf32>
    %448 = vector.extract_strided_slice %445 {offsets = [0, 0], sizes = [2, 32], strides = [1, 1]} : vector<2x96xf32> to vector<2x32xf32>
    %449 = vector.extract_strided_slice %445 {offsets = [0, 32], sizes = [2, 32], strides = [1, 1]} : vector<2x96xf32> to vector<2x32xf32>
    %450 = vector.extract_strided_slice %445 {offsets = [0, 64], sizes = [2, 32], strides = [1, 1]} : vector<2x96xf32> to vector<2x32xf32>
    %451 = arith.mulf %449, %428 : vector<2x32xf32>
    %452 = arith.mulf %448, %447 : vector<2x32xf32>
    %453 = arith.addf %451, %452 : vector<2x32xf32>
    %454 = math.tanh %453 : vector<2x32xf32>
    %455 = arith.mulf %450, %454 : vector<2x32xf32>
    %456 = arith.index_cast %434 : i32 to index
    %c0_157 = arith.constant 0 : index
    %457 = vector.load %arg12[%456, %c0_157] : memref<16x32xf32, #tpu.memory_space<vmem>>, vector<2x32xf32>
    tpu.vector_store %arg12[%456, %c0_157], %455 {strides = array<i32>} : memref<16x32xf32, #tpu.memory_space<vmem>>, vector<2x32xf32>,
    %c7_i32_158 = arith.constant 7 : i32
    %c2_i32_159 = arith.constant 2 : i32
    %458 = arith.muli %c7_i32_158, %c2_i32_159 : i32
    %459 = tpu.assume_multiple %458, 2 : i32
    %460 = arith.index_cast %459 : i32 to index
    %c0_160 = arith.constant 0 : index
    %461 = vector.load %arg11[%460, %c0_160] : memref<16x128xf32, #tpu.memory_space<vmem>>, vector<2x128xf32>
    %462 = arith.truncf %455 : vector<2x32xf32> to vector<2x32xbf16>
    %cst_161 = arith.constant dense<0.000000e+00> : vector<2x128xf32>
    %463 = tpu.matmul %462, %73, %cst_161 {dimension_numbers = #tpu.dot_dimension_numbers<[1], [0], [0], [1], [0, 0, 1, 1], [], []>} : vector<2x32xbf16>, vector<32x128xbf16>, vector<2x128xf32> -> vector<2x128xf32>
    %464 = arith.addf %461, %463 : vector<2x128xf32>
    %465 = vector.extract_strided_slice %464 {offsets = [0, 0], sizes = [2, 96], strides = [1, 1]} : vector<2x128xf32> to vector<2x96xf32>
    %466 = arith.negf %465 : vector<2x96xf32>
    %467 = math.exp %466 : vector<2x96xf32>
    %cst_162 = arith.constant 1.000000e+00 : f32
    %468 = vector.broadcast %cst_162 : f32 to vector<2x96xf32>
    %469 = arith.addf %468, %467 : vector<2x96xf32>
    %470 = arith.divf %468, %469 : vector<2x96xf32>
    %471 = vector.extract_strided_slice %464 {offsets = [0, 96], sizes = [2, 32], strides = [1, 1]} : vector<2x128xf32> to vector<2x32xf32>
    %472 = math.tanh %471 : vector<2x32xf32>
    %473 = vector.extract_strided_slice %470 {offsets = [0, 0], sizes = [2, 32], strides = [1, 1]} : vector<2x96xf32> to vector<2x32xf32>
    %474 = vector.extract_strided_slice %470 {offsets = [0, 32], sizes = [2, 32], strides = [1, 1]} : vector<2x96xf32> to vector<2x32xf32>
    %475 = vector.extract_strided_slice %470 {offsets = [0, 64], sizes = [2, 32], strides = [1, 1]} : vector<2x96xf32> to vector<2x32xf32>
    %476 = arith.mulf %474, %453 : vector<2x32xf32>
    %477 = arith.mulf %473, %472 : vector<2x32xf32>
    %478 = arith.addf %476, %477 : vector<2x32xf32>
    %479 = math.tanh %478 : vector<2x32xf32>
    %480 = arith.mulf %475, %479 : vector<2x32xf32>
    %481 = arith.index_cast %459 : i32 to index
    %c0_163 = arith.constant 0 : index
    %482 = vector.load %arg12[%481, %c0_163] : memref<16x32xf32, #tpu.memory_space<vmem>>, vector<2x32xf32>
    tpu.vector_store %arg12[%481, %c0_163], %480 {strides = array<i32>} : memref<16x32xf32, #tpu.memory_space<vmem>>, vector<2x32xf32>,
    %c8_i32_164 = arith.constant 8 : i32
    %c0_165 = arith.constant 0 : index
    %c0_166 = arith.constant 0 : index
    %483 = vector.load %arg12[%c0_165, %c0_166] : memref<16x32xf32, #tpu.memory_space<vmem>>, vector<16x32xf32>
    %484 = arith.truncf %483 : vector<16x32xf32> to vector<16x32xbf16>
    %c0_167 = arith.constant 0 : index
    %c0_168 = arith.constant 0 : index
    %485 = vector.load %arg8[%c0_167, %c0_168] : memref<32x8xbf16, #tpu.memory_space<vmem>>, vector<32x8xbf16>
    %cst_169 = arith.constant dense<0.000000e+00> : vector<16x8xf32>
    %486 = tpu.matmul %484, %485, %cst_169 {dimension_numbers = #tpu.dot_dimension_numbers<[1], [0], [0], [1], [0, 0, 1, 1], [], []>} : vector<16x32xbf16>, vector<32x8xbf16>, vector<16x8xf32> -> vector<16x8xf32>
    %c0_170 = arith.constant 0 : index
    %c0_171 = arith.constant 0 : index
    %487 = vector.load %arg9[%c0_170, %c0_171] : memref<1x8xf32, #tpu.memory_space<vmem>>, vector<1x8xf32>
    %488 = vector.broadcast %487 : vector<1x8xf32> to vector<16x8xf32>
    %489 = arith.addf %486, %488 : vector<16x8xf32>
    %c0_172 = arith.constant 0 : index
    %c0_173 = arith.constant 0 : index
    %490 = vector.load %arg10[%c0_172, %c0_173] : memref<16x8xf32, #tpu.memory_space<vmem>>, vector<16x8xf32>
    tpu.vector_store %arg10[%c0_172, %c0_173], %489 {strides = array<i32>} : memref<16x8xf32, #tpu.memory_space<vmem>>, vector<16x8xf32>,
    return
  }
}

</mosaic_0001>

<llo_original>
// kernel: lstm_ner_forward.1
$region0: #{lstm_ner_forward.1}
  #allocation0 [shape = 'u32[]', space=smem, size = 0x4, offset = 0x4, fixed_abs, tag = 'smem constant byte address 0x4 - core index']
  #allocation1 [shape = 'u32[144,128]{1,0:T(1,128)}', space=vmem, size = 0x12000, scoped, tag = 'internal scratch']
  #allocation2 [shape = 'f32[16,128]{1,0:T(8,128)}', space=vmem, size = 0x2000, scoped, tag = 'scratch operand']
  #allocation3 [shape = 'f32[16,32]{1,0:T(8,128)}', space=vmem, size = 0x2000, scoped, tag = 'scratch operand']
  %s0 = inlined_call_operand.vmem [shape: s32[2,8], index: 0, kind: input, shape index: {}]
  %s1 = inlined_call_operand.vmem [shape: f32[50,1,32], index: 1, kind: input, shape index: {}]
  %s2 = inlined_call_operand.vmem [shape: bf16[32,128], index: 2, kind: input, shape index: {}]
  %s3 = inlined_call_operand.vmem [shape: bf16[32,128], index: 3, kind: input, shape index: {}]
  %s4 = inlined_call_operand.vmem [shape: f32[1,128], index: 4, kind: input, shape index: {}]
  %s5 = inlined_call_operand.vmem [shape: bf16[32,128], index: 5, kind: input, shape index: {}]
  %s6 = inlined_call_operand.vmem [shape: bf16[32,128], index: 6, kind: input, shape index: {}]
  %s7 = inlined_call_operand.vmem [shape: f32[1,128], index: 7, kind: input, shape index: {}]
  %s8 = inlined_call_operand.vmem [shape: bf16[32,8], index: 8, kind: input, shape index: {}]
  %s9 = inlined_call_operand.vmem [shape: f32[1,8], index: 9, kind: input, shape index: {}]
  %s10 = inlined_call_operand.vmem [shape: f32[16,8], index: 10, kind: output, shape index: {}]
  %s11 = sld [smem:[#allocation0]]
  $region54: #{lstm_ner_forward.1} parent=0
    _
  %s13 = ssub.s32 1, %s11
  %s14 = scalar_select 0, %s13, %s11
  $region1: #{lstm_ner_forward.1} parent=0
    #allocation4 [shape = 'u8[1024]{0}', space=smem, size = 0x400, scoped, tag = 'input window, operand 0, single buffered']
    #allocation5 [shape = 's32[1]{0}', space=sflag, size = 0x4, scoped, tag = 'scoped memory for lstm_ner_forward.1']
    %15 = vsyncpa [#allocation5], 0
    // Predicated region
    $region2: #{lstm_ner_forward.1} parent=1 // pred_check
      _
    $region3: #{lstm_ner_forward.1} parent=1 // pred_check_branch
      %17 = sbr.rel (0) target = $region5
    $region4: #{lstm_ner_forward.1} parent=1 // pred_region
      %s19 = ssub.s32 32, 32
      %20 = vsyncadd [#allocation5], %s19
      %s22 = sshll.u32 %s0, 4
      %s23 = int_to_ptr.vmem [resolvable:$true] %s22
      %25 = dma.vmem_to_smem %s23, 32, [#allocation4], [#allocation5]
    $region5: #{lstm_ner_forward.1} parent=1 // pred_fallthru
      _
    // Predicated region
    $region6: #{lstm_ner_forward.1} parent=1 // pred_check
      _
    $region7: #{lstm_ner_forward.1} parent=1 // pred_check_branch
      %27 = sbr.rel (0) target = $region9
    $region8: #{lstm_ner_forward.1} parent=1 // pred_region
      _
    $region9: #{lstm_ner_forward.1} parent=1 // pred_fallthru
      _
    // Predicated region
    $region10: #{lstm_ner_forward.1} parent=1 // pred_check
      _
    $region11: #{lstm_ner_forward.1} parent=1 // pred_check_branch
      %29 = sbr.rel (0) target = $region13
    $region12: #{lstm_ner_forward.1} parent=1 // pred_region
      _
    $region13: #{lstm_ner_forward.1} parent=1 // pred_fallthru
      _
    // Predicated region
    $region14: #{lstm_ner_forward.1} parent=1 // pred_check
      _
    $region15: #{lstm_ner_forward.1} parent=1 // pred_check_branch
      %31 = sbr.rel (0) target = $region17
    $region16: #{lstm_ner_forward.1} parent=1 // pred_region
      _
    $region17: #{lstm_ner_forward.1} parent=1 // pred_fallthru
      _
    // Predicated region
    $region18: #{lstm_ner_forward.1} parent=1 // pred_check
      _
    $region19: #{lstm_ner_forward.1} parent=1 // pred_check_branch
      %33 = sbr.rel (0) target = $region21
    $region20: #{lstm_ner_forward.1} parent=1 // pred_region
      _
    $region21: #{lstm_ner_forward.1} parent=1 // pred_fallthru
      _
    // Predicated region
    $region22: #{lstm_ner_forward.1} parent=1 // pred_check
      _
    $region23: #{lstm_ner_forward.1} parent=1 // pred_check_branch
      %35 = sbr.rel (0) target = $region25
    $region24: #{lstm_ner_forward.1} parent=1 // pred_region
      _
    $region25: #{lstm_ner_forward.1} parent=1 // pred_fallthru
      _
    // Predicated region
    $region26: #{lstm_ner_forward.1} parent=1 // pred_check
      _
    $region27: #{lstm_ner_forward.1} parent=1 // pred_check_branch
      %37 = sbr.rel (0) target = $region29
    $region28: #{lstm_ner_forward.1} parent=1 // pred_region
      _
    $region29: #{lstm_ner_forward.1} parent=1 // pred_fallthru
      _
    // Predicated region
    $region30: #{lstm_ner_forward.1} parent=1 // pred_check
      _
    $region31: #{lstm_ner_forward.1} parent=1 // pred_check_branch
      %39 = sbr.rel (0) target = $region33
    $region32: #{lstm_ner_forward.1} parent=1 // pred_region
      _
    $region33: #{lstm_ner_forward.1} parent=1 // pred_fallthru
      _
    // Predicated region
    $region34: #{lstm_ner_forward.1} parent=1 // pred_check
      _
    $region35: #{lstm_ner_forward.1} parent=1 // pred_check_branch
      %41 = sbr.rel (0) target = $region37
    $region36: #{lstm_ner_forward.1} parent=1 // pred_region
      _
    $region37: #{lstm_ner_forward.1} parent=1 // pred_fallthru
      _
    // Predicated region
    $region38: #{lstm_ner_forward.1} parent=1 // pred_check
      _
    $region39: #{lstm_ner_forward.1} parent=1 // pred_check_branch
      %43 = sbr.rel (0) target = $region41
    $region40: #{lstm_ner_forward.1} parent=1 // pred_region
      _
    $region41: #{lstm_ner_forward.1} parent=1 // pred_fallthru
      _
    // Predicated region
    $region42: #{lstm_ner_forward.1} parent=1 // pred_check
      _
    $region43: #{lstm_ner_forward.1} parent=1 // pred_check_branch
      %45 = sbr.rel (0) target = $region45
    $region44: #{lstm_ner_forward.1} parent=1 // pred_region
      %46 = dma.done [#allocation5], 32
    $region45: #{lstm_ner_forward.1} parent=1 // pred_fallthru
      _
    %47 = sfence
    %s49 = sld [smem:[#allocation4]]
    %s50 = scalar_lea.vmem %s1, %s49
    %v51 = vld [vmem:[%s50] sm:$0x1]
    %s52 = sld [smem:[#allocation4 + $0x80]]
    %s53 = scalar_lea.vmem %s1, %s52
    %v54 = vld [vmem:[%s53] sm:$0x1]
    %s55 = sld [smem:[#allocation4 + $0x1]]
    %s56 = scalar_lea.vmem %s1, %s55
    %v57 = vld [vmem:[%s56] sm:$0x1]
    %s58 = sld [smem:[#allocation4 + $0x81]]
    %s59 = scalar_lea.vmem %s1, %s58
    %v60 = vld [vmem:[%s59] sm:$0x1]
    %s61 = sld [smem:[#allocation4 + $0x2]]
    %s62 = scalar_lea.vmem %s1, %s61
    %v63 = vld [vmem:[%s62] sm:$0x1]
    %s64 = sld [smem:[#allocation4 + $0x82]]
    %s65 = scalar_lea.vmem %s1, %s64
    %v66 = vld [vmem:[%s65] sm:$0x1]
    %s67 = sld [smem:[#allocation4 + $0x3]]
    %s68 = scalar_lea.vmem %s1, %s67
    %v69 = vld [vmem:[%s68] sm:$0x1]
    %s70 = sld [smem:[#allocation4 + $0x83]]
    %s71 = scalar_lea.vmem %s1, %s70
    %v72 = vld [vmem:[%s71] sm:$0x1]
    %s73 = sld [smem:[#allocation4 + $0x4]]
    %s74 = scalar_lea.vmem %s1, %s73
    %v75 = vld [vmem:[%s74] sm:$0x1]
    %s76 = sld [smem:[#allocation4 + $0x84]]
    %s77 = scalar_lea.vmem %s1, %s76
    %v78 = vld [vmem:[%s77] sm:$0x1]
    %s79 = sld [smem:[#allocation4 + $0x5]]
    %s80 = scalar_lea.vmem %s1, %s79
    %v81 = vld [vmem:[%s80] sm:$0x1]
    %s82 = sld [smem:[#allocation4 + $0x85]]
    %s83 = scalar_lea.vmem %s1, %s82
    %v84 = vld [vmem:[%s83] sm:$0x1]
    %s85 = sld [smem:[#allocation4 + $0x6]]
    %s86 = scalar_lea.vmem %s1, %s85
    %v87 = vld [vmem:[%s86] sm:$0x1]
    %s88 = sld [smem:[#allocation4 + $0x86]]
    %s89 = scalar_lea.vmem %s1, %s88
    %v90 = vld [vmem:[%s89] sm:$0x1]
    %s91 = sld [smem:[#allocation4 + $0x7]]
    %s92 = scalar_lea.vmem %s1, %s91
    %v93 = vld [vmem:[%s92] sm:$0x1]
    %s94 = sld [smem:[#allocation4 + $0x87]]
    %s95 = scalar_lea.vmem %s1, %s94
    %v96 = vld [vmem:[%s95] sm:$0x1]
    %v98 = vlaneseq
    %v99 = vshrl.u32 %v98, 7
    %v100 = vsub.s32 0, %v99
    %v101 = vrot.slane %v54, %v100
    %v104 = vlaneseq
    %v105 = vshrl.u32 %v104, 7
    %v106 = vsub.s32 0, %v105
    %v107 = vrot.slane %v57, %v106
    %v110 = vlaneseq
    %v111 = vshrl.u32 %v110, 7
    %v112 = vsub.s32 0, %v111
    %v113 = vrot.slane %v60, %v112
    %v116 = vlaneseq
    %v117 = vshrl.u32 %v116, 7
    %v118 = vsub.s32 0, %v117
    %v119 = vrot.slane %v63, %v118
    %v122 = vlaneseq
    %v123 = vshrl.u32 %v122, 7
    %v124 = vsub.s32 0, %v123
    %v125 = vrot.slane %v66, %v124
    %v128 = vlaneseq
    %v129 = vshrl.u32 %v128, 7
    %v130 = vsub.s32 0, %v129
    %v131 = vrot.slane %v69, %v130
    %v134 = vlaneseq
    %v135 = vshrl.u32 %v134, 7
    %v136 = vsub.s32 0, %v135
    %v137 = vrot.slane %v72, %v136
    %v140 = vlaneseq
    %v141 = vshrl.u32 %v140, 7
    %v142 = vsub.s32 0, %v141
    %v143 = vrot.slane %v78, %v142
    %v146 = vlaneseq
    %v147 = vshrl.u32 %v146, 7
    %v148 = vsub.s32 0, %v147
    %v149 = vrot.slane %v81, %v148
    %v152 = vlaneseq
    %v153 = vshrl.u32 %v152, 7
    %v154 = vsub.s32 0, %v153
    %v155 = vrot.slane %v84, %v154
    %v158 = vlaneseq
    %v159 = vshrl.u32 %v158, 7
    %v160 = vsub.s32 0, %v159
    %v161 = vrot.slane %v87, %v160
    %v164 = vlaneseq
    %v165 = vshrl.u32 %v164, 7
    %v166 = vsub.s32 0, %v165
    %v167 = vrot.slane %v90, %v166
    %v170 = vlaneseq
    %v171 = vshrl.u32 %v170, 7
    %v172 = vsub.s32 0, %v171
    %v173 = vrot.slane %v93, %v172
    %v176 = vlaneseq
    %v177 = vshrl.u32 %v176, 7
    %v178 = vsub.s32 0, %v177
    %v179 = vrot.slane %v96, %v178
    %vm181 = vcmask 1040384
    %v182 = vsel %vm181, %v51, %v101
    %vm183 = vcmask 1041408
    %v184 = vsel %vm183, %v182, %v107
    %vm185 = vcmask 1042432
    %v186 = vsel %vm185, %v184, %v113
    %vm187 = vcmask 1043456
    %v188 = vsel %vm187, %v186, %v119
    %vm189 = vcmask 1044480
    %v190 = vsel %vm189, %v188, %v125
    %vm191 = vcmask 1045504
    %v192 = vsel %vm191, %v190, %v131
    %vm193 = vcmask 1046528
    %v194 = vsel %vm193, %v192, %v137
    %v195 = vsel %vm181, %v75, %v143
    %v196 = vsel %vm183, %v195, %v149
    %v197 = vsel %vm185, %v196, %v155
    %v198 = vsel %vm187, %v197, %v161
    %v199 = vsel %vm189, %v198, %v167
    %v200 = vsel %vm191, %v199, %v173
    %v201 = vsel %vm193, %v200, %v179
    %v202 = vpack.c.bf16 %v201, %v194
    %v203 = vld [vmem:[%s2] sm:$0xf]
    %v204 = vld [vmem:[%s2 + $0x4] sm:$0xf]
    %v205 = vld [vmem:[%s2 + $0x8] sm:$0xf]
    %v206 = vld [vmem:[%s2 + $0xc] sm:$0xf]
    %v207 = vld [vmem:[%s4] sm:$0x1]
    %v209 = vlaneseq
    %v210 = vshrl.u32 %v209, 7
    %v211 = vsub.s32 0, %v210
    %v212 = vrot.slane %v207, %v211
    %v218 = vunpack.c.l.b16 %v203
    %v219 = vunpack.c.l.b16 %v204
    %v220 = vunpack.c.l.b16 %v205
    %v221 = vunpack.c.l.b16 %v206
    %v222 = vpack.c.b16 %v219, %v218
    %v223 = vpack.c.b16 %v221, %v220
    %vm226 = vcmask 261120
    %v228 = vsel %vm226, %v202, 0
    %230 = vmatprep.subr.bf16.mxu0 0
    %231 = vmatpush1.bf16.msra.mxu0 %v222
    %232 = vmatprep.subr.bf16.mxu0 0
    %233 = vmatpush1.bf16.msra.mxu0 %v223
    %234 = vmatprep.subr.bf16.mxu0 0
    %235 = vmatpush1.bf16.msra.mxu0 0
    %236 = vmatprep.subr.bf16.mxu0 0
    %237 = vmatpush1.bf16.msra.mxu0 0
    %238 = vmatprep.subr.bf16.mxu0 0
    %239 = vmatpush1.bf16.msra.mxu0 0
    %240 = vmatprep.subr.bf16.mxu0 0
    %241 = vmatpush1.bf16.msra.mxu0 0
    %242 = vmatprep.subr.bf16.mxu0 0
    %243 = vmatpush1.bf16.msra.mxu0 0
    %244 = vmatprep.subr.bf16.mxu0 0
    %245 = vmatpush1.bf16.msra.mxu0 0
    %246 = vmatprep.subr.bf16.mxu0 0
    %247 = vmatpush1.bf16.msra.mxu0 0
    %248 = vmatprep.subr.bf16.mxu0 0
    %249 = vmatpush1.bf16.msra.mxu0 0
    %250 = vmatprep.subr.bf16.mxu0 0
    %251 = vmatpush1.bf16.msra.mxu0 0
    %252 = vmatprep.subr.bf16.mxu0 0
    %253 = vmatpush1.bf16.msra.mxu0 0
    %254 = vmatprep.subr.bf16.mxu0 0
    %255 = vmatpush1.bf16.msra.mxu0 0
    %256 = vmatprep.subr.bf16.mxu0 0
    %257 = vmatpush1.bf16.msra.mxu0 0
    %258 = vmatprep.subr.bf16.mxu0 0
    %259 = vmatpush1.bf16.msra.mxu0 0
    %260 = vmatprep.subr.bf16.mxu0 0
    %261 = vmatpush1.bf16.msra.mxu0 0
    %262 = vmatprep.mubr.bf16.mxu0 0
    %263 = vmatmul.mubr.bf16.gmra.mrb[0].mxu0 %v228
    %v264 = vpop.f32.mrb[0].mxu0
    %v265 = vadd.f32 %v212, %v264
    %v266 = vpop.f32.mrb[0].mxu0
    %v267 = vpop.f32.mrb[0].mxu0
    %v268 = vadd.f32 %v212, %v267
    %v269 = vpop.f32.mrb[0].mxu0
    %270 = vdwg.mxu0
    %271 = vst [vmem:[#allocation2] sm:$0xff] %v265
    %272 = vst [vmem:[#allocation2 + $0x8] sm:$0xff] %v268
    %v273 = vld [vmem:[%s3] sm:$0xf]
    %v274 = vld [vmem:[%s3 + $0x4] sm:$0xf]
    %v275 = vld [vmem:[%s3 + $0x8] sm:$0xf]
    %v276 = vld [vmem:[%s3 + $0xc] sm:$0xf]
    %v277 = vld [vmem:[%s6] sm:$0xf]
    %v278 = vld [vmem:[%s6 + $0x4] sm:$0xf]
    %v279 = vld [vmem:[%s6 + $0x8] sm:$0xf]
    %v280 = vld [vmem:[%s6 + $0xc] sm:$0xf]
    %v281 = vld [vmem:[#allocation2] sm:$0x3]
    %v286 = vunpack.c.l.b16 %v273
    %v287 = vunpack.c.l.b16 %v274
    %v288 = vunpack.c.l.b16 %v275
    %v289 = vunpack.c.l.b16 %v276
    %v290 = vpack.c.b16 %v287, %v286
    %v291 = vpack.c.b16 %v289, %v288
    %v295 = vsel %vm226, 0, 0
    %297 = vmatprep.subr.bf16.mxu0 0
    %298 = vmatpush1.bf16.msra.mxu0 %v290
    %299 = vmatprep.subr.bf16.mxu0 0
    %300 = vmatpush1.bf16.msra.mxu0 %v291
    %301 = vmatprep.subr.bf16.mxu0 0
    %302 = vmatpush1.bf16.msra.mxu0 0
    %303 = vmatprep.subr.bf16.mxu0 0
    %304 = vmatpush1.bf16.msra.mxu0 0
    %305 = vmatprep.subr.bf16.mxu0 0
    %306 = vmatpush1.bf16.msra.mxu0 0
    %307 = vmatprep.subr.bf16.mxu0 0
    %308 = vmatpush1.bf16.msra.mxu0 0
    %309 = vmatprep.subr.bf16.mxu0 0
    %310 = vmatpush1.bf16.msra.mxu0 0
    %311 = vmatprep.subr.bf16.mxu0 0
    %312 = vmatpush1.bf16.msra.mxu0 0
    %313 = vmatprep.subr.bf16.mxu0 0
    %314 = vmatpush1.bf16.msra.mxu0 0
    %315 = vmatprep.subr.bf16.mxu0 0
    %316 = vmatpush1.bf16.msra.mxu0 0
    %317 = vmatprep.subr.bf16.mxu0 0
    %318 = vmatpush1.bf16.msra.mxu0 0
    %319 = vmatprep.subr.bf16.mxu0 0
    %320 = vmatpush1.bf16.msra.mxu0 0
    %321 = vmatprep.subr.bf16.mxu0 0
    %322 = vmatpush1.bf16.msra.mxu0 0
    %323 = vmatprep.subr.bf16.mxu0 0
    %324 = vmatpush1.bf16.msra.mxu0 0
    %325 = vmatprep.subr.bf16.mxu0 0
    %326 = vmatpush1.bf16.msra.mxu0 0
    %327 = vmatprep.subr.bf16.mxu0 0
    %328 = vmatpush1.bf16.msra.mxu0 0
    %329 = vmatprep.mubr.bf16.mxu0 0
    %330 = vmatmul.mubr.bf16.gmra.mrb[0].mxu0 %v295
    %v331 = vpop.f32.mrb[0].mxu0
    %v332 = vadd.f32 0.0, %v331
    %v333 = vpop.f32.mrb[0].mxu0
    %v334 = vpop.f32.mrb[0].mxu0
    %v335 = vpop.f32.mrb[0].mxu0
    %336 = vdwg.mxu0
    %v337 = vadd.f32 %v281, %v332
    %v338 = vxor.u32 %v337, 2147483648
    %v339 = vmul.f32 %v338, 1.442695
    %v340 = vpow.pop %v339
    %v341 = vadd.f32 %v340, 1.0
    %v342 = vrcp.pop %v341
    %v343 = vmul.f32 1.0, %v342
    %v344 = vtanh.pop %v337
    %v345 = vmul.f32 %v343, 0.0
    %347 = vrot.lane.b32.xlu0 %v344, 32
    %v348 = vpop.permute.xlu0 %347
    %v350 = vmul.f32 %v343, %v348
    %352 = vrot.lane.b32.xlu0 %v350, 32
    %v353 = vpop.permute.xlu0 %352
    %v355 = vadd.f32 %v345, %v353
    %v356 = vtanh.pop %v355
    %358 = vrot.lane.b32.xlu0 %v356, 32
    %v359 = vpop.permute.xlu0 %358
    %v361 = vmul.f32 %v343, %v359
    %363 = vrot.lane.b32.xlu0 %v361, 64
    %v364 = vpop.permute.xlu0 %363
    %vm366 = vcmask 254976
    %367 = vst.msk [vmem:[#allocation3] sm:$0x3] %vm366, %v364
    %s368 = scalar_lea.vmem [#allocation2], 2
    %v369 = vld [vmem:[%s368] sm:$0x3]
    %v370 = vpack.c.bf16 %v361, %v361
    %372 = vrot.lane.b32.xlu0 %v370, 64
    %v373 = vpop.permute.xlu0 %372
    %v375 = vsel %vm226, %v373, 0
    %377 = vmatprep.subr.bf16.mxu0 0
    %378 = vmatpush1.bf16.msra.mxu0 %v290
    %379 = vmatprep.subr.bf16.mxu0 0
    %380 = vmatpush1.bf16.msra.mxu0 %v291
    %381 = vmatprep.subr.bf16.mxu0 0
    %382 = vmatpush1.bf16.msra.mxu0 0
    %383 = vmatprep.subr.bf16.mxu0 0
    %384 = vmatpush1.bf16.msra.mxu0 0
    %385 = vmatprep.subr.bf16.mxu0 0
    %386 = vmatpush1.bf16.msra.mxu0 0
    %387 = vmatprep.subr.bf16.mxu0 0
    %388 = vmatpush1.bf16.msra.mxu0 0
    %389 = vmatprep.subr.bf16.mxu0 0
    %390 = vmatpush1.bf16.msra.mxu0 0
    %391 = vmatprep.subr.bf16.mxu0 0
    %392 = vmatpush1.bf16.msra.mxu0 0
    %393 = vmatprep.subr.bf16.mxu0 0
    %394 = vmatpush1.bf16.msra.mxu0 0
    %395 = vmatprep.subr.bf16.mxu0 0
    %396 = vmatpush1.bf16.msra.mxu0 0
    %397 = vmatprep.subr.bf16.mxu0 0
    %398 = vmatpush1.bf16.msra.mxu0 0
    %399 = vmatprep.subr.bf16.mxu0 0
    %400 = vmatpush1.bf16.msra.mxu0 0
    %401 = vmatprep.subr.bf16.mxu0 0
    %402 = vmatpush1.bf16.msra.mxu0 0
    %403 = vmatprep.subr.bf16.mxu0 0
    %404 = vmatpush1.bf16.msra.mxu0 0
    %405 = vmatprep.subr.bf16.mxu0 0
    %406 = vmatpush1.bf16.msra.mxu0 0
    %407 = vmatprep.subr.bf16.mxu0 0
    %408 = vmatpush1.bf16.msra.mxu0 0
    %409 = vmatprep.mubr.bf16.mxu0 0
    %410 = vmatmul.mubr.bf16.gmra.mrb[0].mxu0 %v375
    %v411 = vpop.f32.mrb[0].mxu0
    %v412 = vadd.f32 0.0, %v411
    %v413 = vpop.f32.mrb[0].mxu0
    %v414 = vpop.f32.mrb[0].mxu0
    %v415 = vpop.f32.mrb[0].mxu0
    %416 = vdwg.mxu0
    %v417 = vadd.f32 %v369, %v412
    %v418 = vxor.u32 %v417, 2147483648
    %v419 = vmul.f32 %v418, 1.442695
    %v420 = vpow.pop %v419
    %v421 = vadd.f32 %v420, 1.0
    %v422 = vrcp.pop %v421
    %v423 = vmul.f32 1.0, %v422
    %v424 = vtanh.pop %v417
    %v425 = vmul.f32 %v423, %v355
    %427 = vrot.lane.b32.xlu0 %v424, 32
    %v428 = vpop.permute.xlu0 %427
    %v430 = vmul.f32 %v423, %v428
    %432 = vrot.lane.b32.xlu0 %v430, 32
    %v433 = vpop.permute.xlu0 %432
    %v435 = vadd.f32 %v425, %v433
    %v436 = vtanh.pop %v435
    %438 = vrot.lane.b32.xlu0 %v436, 32
    %v439 = vpop.permute.xlu0 %438
    %v441 = vmul.f32 %v423, %v439
    %443 = vrot.lane.b32.xlu0 %v441, 64
    %v444 = vpop.permute.xlu0 %443
    %s446 = scalar_lea.vmem [#allocation3], 2
    %447 = vst.msk [vmem:[%s446] sm:$0x3] %vm366, %v444
    %s448 = scalar_lea.vmem [#allocation2], 4
    %v449 = vld [vmem:[%s448] sm:$0x3]
    %v450 = vpack.c.bf16 %v441, %v441
    %452 = vrot.lane.b32.xlu0 %v450, 64
    %v453 = vpop.permute.xlu0 %452
    %v455 = vsel %vm226, %v453, 0
    %457 = vmatprep.subr.bf16.mxu0 0
    %458 = vmatpush1.bf16.msra.mxu0 %v290
    %459 = vmatprep.subr.bf16.mxu0 0
    %460 = vmatpush1.bf16.msra.mxu0 %v291
    %461 = vmatprep.subr.bf16.mxu0 0
    %462 = vmatpush1.bf16.msra.mxu0 0
    %463 = vmatprep.subr.bf16.mxu0 0
    %464 = vmatpush1.bf16.msra.mxu0 0
    %465 = vmatprep.subr.bf16.mxu0 0
    %466 = vmatpush1.bf16.msra.mxu0 0
    %467 = vmatprep.subr.bf16.mxu0 0
    %468 = vmatpush1.bf16.msra.mxu0 0
    %469 = vmatprep.subr.bf16.mxu0 0
    %470 = vmatpush1.bf16.msra.mxu0 0
    %471 = vmatprep.subr.bf16.mxu0 0
    %472 = vmatpush1.bf16.msra.mxu0 0
    %473 = vmatprep.subr.bf16.mxu0 0
    %474 = vmatpush1.bf16.msra.mxu0 0
    %475 = vmatprep.subr.bf16.mxu0 0
    %476 = vmatpush1.bf16.msra.mxu0 0
    %477 = vmatprep.subr.bf16.mxu0 0
    %478 = vmatpush1.bf16.msra.mxu0 0
    %479 = vmatprep.subr.bf16.mxu0 0
    %480 = vmatpush1.bf16.msra.mxu0 0
    %481 = vmatprep.subr.bf16.mxu0 0
    %482 = vmatpush1.bf16.msra.mxu0 0
    %483 = vmatprep.subr.bf16.mxu0 0
    %484 = vmatpush1.bf16.msra.mxu0 0
    %485 = vmatprep.subr.bf16.mxu0 0
    %486 = vmatpush1.bf16.msra.mxu0 0
    %487 = vmatprep.subr.bf16.mxu0 0
    %488 = vmatpush1.bf16.msra.mxu0 0
    %489 = vmatprep.mubr.bf16.mxu0 0
    %490 = vmatmul.mubr.bf16.gmra.mrb[0].mxu0 %v455
    %v491 = vpop.f32.mrb[0].mxu0
    %v492 = vadd.f32 0.0, %v491
    %v493 = vpop.f32.mrb[0].mxu0
    %v494 = vpop.f32.mrb[0].mxu0
    %v495 = vpop.f32.mrb[0].mxu0
    %496 = vdwg.mxu0
    %v497 = vadd.f32 %v449, %v492
    %v498 = vxor.u32 %v497, 2147483648
    %v499 = vmul.f32 %v498, 1.442695
    %v500 = vpow.pop %v499
    %v501 = vadd.f32 %v500, 1.0
    %v502 = vrcp.pop %v501
    %v503 = vmul.f32 1.0, %v502
    %v504 = vtanh.pop %v497
    %v505 = vmul.f32 %v503, %v435
    %507 = vrot.lane.b32.xlu0 %v504, 32
    %v508 = vpop.permute.xlu0 %507
    %v510 = vmul.f32 %v503, %v508
    %512 = vrot.lane.b32.xlu0 %v510, 32
    %v513 = vpop.permute.xlu0 %512
    %v515 = vadd.f32 %v505, %v513
    %v516 = vtanh.pop %v515
    %518 = vrot.lane.b32.xlu0 %v516, 32
    %v519 = vpop.permute.xlu0 %518
    %v521 = vmul.f32 %v503, %v519
    %523 = vrot.lane.b32.xlu0 %v521, 64
    %v524 = vpop.permute.xlu0 %523
    %s526 = scalar_lea.vmem [#allocation3], 4
    %527 = vst.msk [vmem:[%s526] sm:$0x3] %vm366, %v524
    %s528 = scalar_lea.vmem [#allocation2], 6
    %v529 = vld [vmem:[%s528] sm:$0x3]
    %v530 = vpack.c.bf16 %v521, %v521
    %532 = vrot.lane.b32.xlu0 %v530, 64
    %v533 = vpop.permute.xlu0 %532
    %v535 = vsel %vm226, %v533, 0
    %537 = vmatprep.subr.bf16.mxu0 0
    %538 = vmatpush1.bf16.msra.mxu0 %v290
    %539 = vmatprep.subr.bf16.mxu0 0
    %540 = vmatpush1.bf16.msra.mxu0 %v291
    %541 = vmatprep.subr.bf16.mxu0 0
    %542 = vmatpush1.bf16.msra.mxu0 0
    %543 = vmatprep.subr.bf16.mxu0 0
    %544 = vmatpush1.bf16.msra.mxu0 0
    %545 = vmatprep.subr.bf16.mxu0 0
    %546 = vmatpush1.bf16.msra.mxu0 0
    %547 = vmatprep.subr.bf16.mxu0 0
    %548 = vmatpush1.bf16.msra.mxu0 0
    %549 = vmatprep.subr.bf16.mxu0 0
    %550 = vmatpush1.bf16.msra.mxu0 0
    %551 = vmatprep.subr.bf16.mxu0 0
    %552 = vmatpush1.bf16.msra.mxu0 0
    %553 = vmatprep.subr.bf16.mxu0 0
    %554 = vmatpush1.bf16.msra.mxu0 0
    %555 = vmatprep.subr.bf16.mxu0 0
    %556 = vmatpush1.bf16.msra.mxu0 0
    %557 = vmatprep.subr.bf16.mxu0 0
    %558 = vmatpush1.bf16.msra.mxu0 0
    %559 = vmatprep.subr.bf16.mxu0 0
    %560 = vmatpush1.bf16.msra.mxu0 0
    %561 = vmatprep.subr.bf16.mxu0 0
    %562 = vmatpush1.bf16.msra.mxu0 0
    %563 = vmatprep.subr.bf16.mxu0 0
    %564 = vmatpush1.bf16.msra.mxu0 0
    %565 = vmatprep.subr.bf16.mxu0 0
    %566 = vmatpush1.bf16.msra.mxu0 0
    %567 = vmatprep.subr.bf16.mxu0 0
    %568 = vmatpush1.bf16.msra.mxu0 0
    %569 = vmatprep.mubr.bf16.mxu0 0
    %570 = vmatmul.mubr.bf16.gmra.mrb[0].mxu0 %v535
    %v571 = vpop.f32.mrb[0].mxu0
    %v572 = vadd.f32 0.0, %v571
    %v573 = vpop.f32.mrb[0].mxu0
    %v574 = vpop.f32.mrb[0].mxu0
    %v575 = vpop.f32.mrb[0].mxu0
    %576 = vdwg.mxu0
    %v577 = vadd.f32 %v529, %v572
    %v578 = vxor.u32 %v577, 2147483648
    %v579 = vmul.f32 %v578, 1.442695
    %v580 = vpow.pop %v579
    %v581 = vadd.f32 %v580, 1.0
    %v582 = vrcp.pop %v581
    %v583 = vmul.f32 1.0, %v582
    %v584 = vtanh.pop %v577
    %v585 = vmul.f32 %v583, %v515
    %587 = vrot.lane.b32.xlu0 %v584, 32
    %v588 = vpop.permute.xlu0 %587
    %v590 = vmul.f32 %v583, %v588
    %592 = vrot.lane.b32.xlu0 %v590, 32
    %v593 = vpop.permute.xlu0 %592
    %v595 = vadd.f32 %v585, %v593
    %v596 = vtanh.pop %v595
    %598 = vrot.lane.b32.xlu0 %v596, 32
    %v599 = vpop.permute.xlu0 %598
    %v601 = vmul.f32 %v583, %v599
    %603 = vrot.lane.b32.xlu0 %v601, 64
    %v604 = vpop.permute.xlu0 %603
    %s606 = scalar_lea.vmem [#allocation3], 6
    %607 = vst.msk [vmem:[%s606] sm:$0x3] %vm366, %v604
    %s608 = scalar_lea.vmem [#allocation2], 8
    %v609 = vld [vmem:[%s608] sm:$0x3]
    %v610 = vpack.c.bf16 %v601, %v601
    %612 = vrot.lane.b32.xlu0 %v610, 64
    %v613 = vpop.permute.xlu0 %612
    %v615 = vsel %vm226, %v613, 0
    %617 = vmatprep.subr.bf16.mxu0 0
    %618 = vmatpush1.bf16.msra.mxu0 %v290
    %619 = vmatprep.subr.bf16.mxu0 0
    %620 = vmatpush1.bf16.msra.mxu0 %v291
    %621 = vmatprep.subr.bf16.mxu0 0
    %622 = vmatpush1.bf16.msra.mxu0 0
    %623 = vmatprep.subr.bf16.mxu0 0
    %624 = vmatpush1.bf16.msra.mxu0 0
    %625 = vmatprep.subr.bf16.mxu0 0
    %626 = vmatpush1.bf16.msra.mxu0 0
    %627 = vmatprep.subr.bf16.mxu0 0
    %628 = vmatpush1.bf16.msra.mxu0 0
    %629 = vmatprep.subr.bf16.mxu0 0
    %630 = vmatpush1.bf16.msra.mxu0 0
    %631 = vmatprep.subr.bf16.mxu0 0
    %632 = vmatpush1.bf16.msra.mxu0 0
    %633 = vmatprep.subr.bf16.mxu0 0
    %634 = vmatpush1.bf16.msra.mxu0 0
    %635 = vmatprep.subr.bf16.mxu0 0
    %636 = vmatpush1.bf16.msra.mxu0 0
    %637 = vmatprep.subr.bf16.mxu0 0
    %638 = vmatpush1.bf16.msra.mxu0 0
    %639 = vmatprep.subr.bf16.mxu0 0
    %640 = vmatpush1.bf16.msra.mxu0 0
    %641 = vmatprep.subr.bf16.mxu0 0
    %642 = vmatpush1.bf16.msra.mxu0 0
    %643 = vmatprep.subr.bf16.mxu0 0
    %644 = vmatpush1.bf16.msra.mxu0 0
    %645 = vmatprep.subr.bf16.mxu0 0
    %646 = vmatpush1.bf16.msra.mxu0 0
    %647 = vmatprep.subr.bf16.mxu0 0
    %648 = vmatpush1.bf16.msra.mxu0 0
    %649 = vmatprep.mubr.bf16.mxu0 0
    %650 = vmatmul.mubr.bf16.gmra.mrb[0].mxu0 %v615
    %v651 = vpop.f32.mrb[0].mxu0
    %v652 = vadd.f32 0.0, %v651
    %v653 = vpop.f32.mrb[0].mxu0
    %v654 = vpop.f32.mrb[0].mxu0
    %v655 = vpop.f32.mrb[0].mxu0
    %656 = vdwg.mxu0
    %v657 = vadd.f32 %v609, %v652
    %v658 = vxor.u32 %v657, 2147483648
    %v659 = vmul.f32 %v658, 1.442695
    %v660 = vpow.pop %v659
    %v661 = vadd.f32 %v660, 1.0
    %v662 = vrcp.pop %v661
    %v663 = vmul.f32 1.0, %v662
    %v664 = vtanh.pop %v657
    %v665 = vmul.f32 %v663, %v595
    %667 = vrot.lane.b32.xlu0 %v664, 32
    %v668 = vpop.permute.xlu0 %667
    %v670 = vmul.f32 %v663, %v668
    %672 = vrot.lane.b32.xlu0 %v670, 32
    %v673 = vpop.permute.xlu0 %672
    %v675 = vadd.f32 %v665, %v673
    %v676 = vtanh.pop %v675
    %678 = vrot.lane.b32.xlu0 %v676, 32
    %v679 = vpop.permute.xlu0 %678
    %v681 = vmul.f32 %v663, %v679
    %683 = vrot.lane.b32.xlu0 %v681, 64
    %v684 = vpop.permute.xlu0 %683
    %s686 = scalar_lea.vmem [#allocation3], 8
    %687 = vst.msk [vmem:[%s686] sm:$0x3] %vm366, %v684
    %s688 = scalar_lea.vmem [#allocation2], 10
    %v689 = vld [vmem:[%s688] sm:$0x3]
    %v690 = vpack.c.bf16 %v681, %v681
    %692 = vrot.lane.b32.xlu0 %v690, 64
    %v693 = vpop.permute.xlu0 %692
    %v695 = vsel %vm226, %v693, 0
    %697 = vmatprep.subr.bf16.mxu0 0
    %698 = vmatpush1.bf16.msra.mxu0 %v290
    %699 = vmatprep.subr.bf16.mxu0 0
    %700 = vmatpush1.bf16.msra.mxu0 %v291
    %701 = vmatprep.subr.bf16.mxu0 0
    %702 = vmatpush1.bf16.msra.mxu0 0
    %703 = vmatprep.subr.bf16.mxu0 0
    %704 = vmatpush1.bf16.msra.mxu0 0
    %705 = vmatprep.subr.bf16.mxu0 0
    %706 = vmatpush1.bf16.msra.mxu0 0
    %707 = vmatprep.subr.bf16.mxu0 0
    %708 = vmatpush1.bf16.msra.mxu0 0
    %709 = vmatprep.subr.bf16.mxu0 0
    %710 = vmatpush1.bf16.msra.mxu0 0
    %711 = vmatprep.subr.bf16.mxu0 0
    %712 = vmatpush1.bf16.msra.mxu0 0
    %713 = vmatprep.subr.bf16.mxu0 0
    %714 = vmatpush1.bf16.msra.mxu0 0
    %715 = vmatprep.subr.bf16.mxu0 0
    %716 = vmatpush1.bf16.msra.mxu0 0
    %717 = vmatprep.subr.bf16.mxu0 0
    %718 = vmatpush1.bf16.msra.mxu0 0
    %719 = vmatprep.subr.bf16.mxu0 0
    %720 = vmatpush1.bf16.msra.mxu0 0
    %721 = vmatprep.subr.bf16.mxu0 0
    %722 = vmatpush1.bf16.msra.mxu0 0
    %723 = vmatprep.subr.bf16.mxu0 0
    %724 = vmatpush1.bf16.msra.mxu0 0
    %725 = vmatprep.subr.bf16.mxu0 0
    %726 = vmatpush1.bf16.msra.mxu0 0
    %727 = vmatprep.subr.bf16.mxu0 0
    %728 = vmatpush1.bf16.msra.mxu0 0
    %729 = vmatprep.mubr.bf16.mxu0 0
    %730 = vmatmul.mubr.bf16.gmra.mrb[0].mxu0 %v695
    %v731 = vpop.f32.mrb[0].mxu0
    %v732 = vadd.f32 0.0, %v731
    %v733 = vpop.f32.mrb[0].mxu0
    %v734 = vpop.f32.mrb[0].mxu0
    %v735 = vpop.f32.mrb[0].mxu0
    %736 = vdwg.mxu0
    %v737 = vadd.f32 %v689, %v732
    %v738 = vxor.u32 %v737, 2147483648
    %v739 = vmul.f32 %v738, 1.442695
    %v740 = vpow.pop %v739
    %v741 = vadd.f32 %v740, 1.0
    %v742 = vrcp.pop %v741
    %v743 = vmul.f32 1.0, %v742
    %v744 = vtanh.pop %v737
    %v745 = vmul.f32 %v743, %v675
    %747 = vrot.lane.b32.xlu0 %v744, 32
    %v748 = vpop.permute.xlu0 %747
    %v750 = vmul.f32 %v743, %v748
    %752 = vrot.lane.b32.xlu0 %v750, 32
    %v753 = vpop.permute.xlu0 %752
    %v755 = vadd.f32 %v745, %v753
    %v756 = vtanh.pop %v755
    %758 = vrot.lane.b32.xlu0 %v756, 32
    %v759 = vpop.permute.xlu0 %758
    %v761 = vmul.f32 %v743, %v759
    %763 = vrot.lane.b32.xlu0 %v761, 64
    %v764 = vpop.permute.xlu0 %763
    %s766 = scalar_lea.vmem [#allocation3], 10
    %767 = vst.msk [vmem:[%s766] sm:$0x3] %vm366, %v764
    %s768 = scalar_lea.vmem [#allocation2], 12
    %v769 = vld [vmem:[%s768] sm:$0x3]
    %v770 = vpack.c.bf16 %v761, %v761
    %772 = vrot.lane.b32.xlu0 %v770, 64
    %v773 = vpop.permute.xlu0 %772
    %v775 = vsel %vm226, %v773, 0
    %777 = vmatprep.subr.bf16.mxu0 0
    %778 = vmatpush1.bf16.msra.mxu0 %v290
    %779 = vmatprep.subr.bf16.mxu0 0
    %780 = vmatpush1.bf16.msra.mxu0 %v291
    %781 = vmatprep.subr.bf16.mxu0 0
    %782 = vmatpush1.bf16.msra.mxu0 0
    %783 = vmatprep.subr.bf16.mxu0 0
    %784 = vmatpush1.bf16.msra.mxu0 0
    %785 = vmatprep.subr.bf16.mxu0 0
    %786 = vmatpush1.bf16.msra.mxu0 0
    %787 = vmatprep.subr.bf16.mxu0 0
    %788 = vmatpush1.bf16.msra.mxu0 0
    %789 = vmatprep.subr.bf16.mxu0 0
    %790 = vmatpush1.bf16.msra.mxu0 0
    %791 = vmatprep.subr.bf16.mxu0 0
    %792 = vmatpush1.bf16.msra.mxu0 0
    %793 = vmatprep.subr.bf16.mxu0 0
    %794 = vmatpush1.bf16.msra.mxu0 0
    %795 = vmatprep.subr.bf16.mxu0 0
    %796 = vmatpush1.bf16.msra.mxu0 0
    %797 = vmatprep.subr.bf16.mxu0 0
    %798 = vmatpush1.bf16.msra.mxu0 0
    %799 = vmatprep.subr.bf16.mxu0 0
    %800 = vmatpush1.bf16.msra.mxu0 0
    %801 = vmatprep.subr.bf16.mxu0 0
    %802 = vmatpush1.bf16.msra.mxu0 0
    %803 = vmatprep.subr.bf16.mxu0 0
    %804 = vmatpush1.bf16.msra.mxu0 0
    %805 = vmatprep.subr.bf16.mxu0 0
    %806 = vmatpush1.bf16.msra.mxu0 0
    %807 = vmatprep.subr.bf16.mxu0 0
    %808 = vmatpush1.bf16.msra.mxu0 0
    %809 = vmatprep.mubr.bf16.mxu0 0
    %810 = vmatmul.mubr.bf16.gmra.mrb[0].mxu0 %v775
    %v811 = vpop.f32.mrb[0].mxu0
    %v812 = vadd.f32 0.0, %v811
    %v813 = vpop.f32.mrb[0].mxu0
    %v814 = vpop.f32.mrb[0].mxu0
    %v815 = vpop.f32.mrb[0].mxu0
    %816 = vdwg.mxu0
    %v817 = vadd.f32 %v769, %v812
    %v818 = vxor.u32 %v817, 2147483648
    %v819 = vmul.f32 %v818, 1.442695
    %v820 = vpow.pop %v819
    %v821 = vadd.f32 %v820, 1.0
    %v822 = vrcp.pop %v821
    %v823 = vmul.f32 1.0, %v822
    %v824 = vtanh.pop %v817
    %v825 = vmul.f32 %v823, %v755
    %827 = vrot.lane.b32.xlu0 %v824, 32
    %v828 = vpop.permute.xlu0 %827
    %v830 = vmul.f32 %v823, %v828
    %832 = vrot.lane.b32.xlu0 %v830, 32
    %v833 = vpop.permute.xlu0 %832
    %v835 = vadd.f32 %v825, %v833
    %v836 = vtanh.pop %v835
    %838 = vrot.lane.b32.xlu0 %v836, 32
    %v839 = vpop.permute.xlu0 %838
    %v841 = vmul.f32 %v823, %v839
    %843 = vrot.lane.b32.xlu0 %v841, 64
    %v844 = vpop.permute.xlu0 %843
    %s846 = scalar_lea.vmem [#allocation3], 12
    %847 = vst.msk [vmem:[%s846] sm:$0x3] %vm366, %v844
    %s848 = scalar_lea.vmem [#allocation2], 14
    %v849 = vld [vmem:[%s848] sm:$0x3]
    %v850 = vpack.c.bf16 %v841, %v841
    %852 = vrot.lane.b32.xlu0 %v850, 64
    %v853 = vpop.permute.xlu0 %852
    %v855 = vsel %vm226, %v853, 0
    %857 = vmatprep.subr.bf16.mxu0 0
    %858 = vmatpush1.bf16.msra.mxu0 %v290
    %859 = vmatprep.subr.bf16.mxu0 0
    %860 = vmatpush1.bf16.msra.mxu0 %v291
    %861 = vmatprep.subr.bf16.mxu0 0
    %862 = vmatpush1.bf16.msra.mxu0 0
    %863 = vmatprep.subr.bf16.mxu0 0
    %864 = vmatpush1.bf16.msra.mxu0 0
    %865 = vmatprep.subr.bf16.mxu0 0
    %866 = vmatpush1.bf16.msra.mxu0 0
    %867 = vmatprep.subr.bf16.mxu0 0
    %868 = vmatpush1.bf16.msra.mxu0 0
    %869 = vmatprep.subr.bf16.mxu0 0
    %870 = vmatpush1.bf16.msra.mxu0 0
    %871 = vmatprep.subr.bf16.mxu0 0
    %872 = vmatpush1.bf16.msra.mxu0 0
    %873 = vmatprep.subr.bf16.mxu0 0
    %874 = vmatpush1.bf16.msra.mxu0 0
    %875 = vmatprep.subr.bf16.mxu0 0
    %876 = vmatpush1.bf16.msra.mxu0 0
    %877 = vmatprep.subr.bf16.mxu0 0
    %878 = vmatpush1.bf16.msra.mxu0 0
    %879 = vmatprep.subr.bf16.mxu0 0
    %880 = vmatpush1.bf16.msra.mxu0 0
    %881 = vmatprep.subr.bf16.mxu0 0
    %882 = vmatpush1.bf16.msra.mxu0 0
    %883 = vmatprep.subr.bf16.mxu0 0
    %884 = vmatpush1.bf16.msra.mxu0 0
    %885 = vmatprep.subr.bf16.mxu0 0
    %886 = vmatpush1.bf16.msra.mxu0 0
    %887 = vmatprep.subr.bf16.mxu0 0
    %888 = vmatpush1.bf16.msra.mxu0 0
    %889 = vmatprep.mubr.bf16.mxu0 0
    %890 = vmatmul.mubr.bf16.gmra.mrb[0].mxu0 %v855
    %v891 = vpop.f32.mrb[0].mxu0
    %v892 = vadd.f32 0.0, %v891
    %v893 = vpop.f32.mrb[0].mxu0
    %v894 = vpop.f32.mrb[0].mxu0
    %v895 = vpop.f32.mrb[0].mxu0
    %896 = vdwg.mxu0
    %v897 = vadd.f32 %v849, %v892
    %v898 = vxor.u32 %v897, 2147483648
    %v899 = vmul.f32 %v898, 1.442695
    %v900 = vpow.pop %v899
    %v901 = vadd.f32 %v900, 1.0
    %v902 = vrcp.pop %v901
    %v903 = vmul.f32 1.0, %v902
    %v904 = vtanh.pop %v897
    %v905 = vmul.f32 %v903, %v835
    %907 = vrot.lane.b32.xlu0 %v904, 32
    %v908 = vpop.permute.xlu0 %907
    %v910 = vmul.f32 %v903, %v908
    %912 = vrot.lane.b32.xlu0 %v910, 32
    %v913 = vpop.permute.xlu0 %912
    %v915 = vadd.f32 %v905, %v913
    %v916 = vtanh.pop %v915
    %918 = vrot.lane.b32.xlu0 %v916, 32
    %v919 = vpop.permute.xlu0 %918
    %v921 = vmul.f32 %v903, %v919
    %923 = vrot.lane.b32.xlu0 %v921, 64
    %v924 = vpop.permute.xlu0 %923
    %s926 = scalar_lea.vmem [#allocation3], 14
    %927 = vst.msk [vmem:[%s926] sm:$0x3] %vm366, %v924
    %v928 = vld [vmem:[#allocation3] sm:$0xff]
    %v929 = vld [vmem:[#allocation3 + $0x8] sm:$0xff]
    %v930 = vpack.c.bf16 %v929, %v928
    %v931 = vld [vmem:[%s5] sm:$0xf]
    %v932 = vld [vmem:[%s5 + $0x4] sm:$0xf]
    %v933 = vld [vmem:[%s5 + $0x8] sm:$0xf]
    %v934 = vld [vmem:[%s5 + $0xc] sm:$0xf]
    %v935 = vld [vmem:[%s7] sm:$0x1]
    %v937 = vlaneseq
    %v938 = vshrl.u32 %v937, 7
    %v939 = vsub.s32 0, %v938
    %v940 = vrot.slane %v935, %v939
    %v946 = vunpack.c.l.b16 %v931
    %v947 = vunpack.c.l.b16 %v932
    %v948 = vunpack.c.l.b16 %v933
    %v949 = vunpack.c.l.b16 %v934
    %v950 = vpack.c.b16 %v947, %v946
    %v951 = vpack.c.b16 %v949, %v948
    %v955 = vsel %vm226, %v930, 0
    %957 = vmatprep.subr.bf16.mxu0 0
    %958 = vmatpush1.bf16.msra.mxu0 %v950
    %959 = vmatprep.subr.bf16.mxu0 0
    %960 = vmatpush1.bf16.msra.mxu0 %v951
    %961 = vmatprep.subr.bf16.mxu0 0
    %962 = vmatpush1.bf16.msra.mxu0 0
    %963 = vmatprep.subr.bf16.mxu0 0
    %964 = vmatpush1.bf16.msra.mxu0 0
    %965 = vmatprep.subr.bf16.mxu0 0
    %966 = vmatpush1.bf16.msra.mxu0 0
    %967 = vmatprep.subr.bf16.mxu0 0
    %968 = vmatpush1.bf16.msra.mxu0 0
    %969 = vmatprep.subr.bf16.mxu0 0
    %970 = vmatpush1.bf16.msra.mxu0 0
    %971 = vmatprep.subr.bf16.mxu0 0
    %972 = vmatpush1.bf16.msra.mxu0 0
    %973 = vmatprep.subr.bf16.mxu0 0
    %974 = vmatpush1.bf16.msra.mxu0 0
    %975 = vmatprep.subr.bf16.mxu0 0
    %976 = vmatpush1.bf16.msra.mxu0 0
    %977 = vmatprep.subr.bf16.mxu0 0
    %978 = vmatpush1.bf16.msra.mxu0 0
    %979 = vmatprep.subr.bf16.mxu0 0
    %980 = vmatpush1.bf16.msra.mxu0 0
    %981 = vmatprep.subr.bf16.mxu0 0
    %982 = vmatpush1.bf16.msra.mxu0 0
    %983 = vmatprep.subr.bf16.mxu0 0
    %984 = vmatpush1.bf16.msra.mxu0 0
    %985 = vmatprep.subr.bf16.mxu0 0
    %986 = vmatpush1.bf16.msra.mxu0 0
    %987 = vmatprep.subr.bf16.mxu0 0
    %988 = vmatpush1.bf16.msra.mxu0 0
    %989 = vmatprep.mubr.bf16.mxu0 0
    %990 = vmatmul.mubr.bf16.gmra.mrb[0].mxu0 %v955
    %v991 = vpop.f32.mrb[0].mxu0
    %v992 = vadd.f32 %v940, %v991
    %v993 = vpop.f32.mrb[0].mxu0
    %v994 = vpop.f32.mrb[0].mxu0
    %v995 = vadd.f32 %v940, %v994
    %v996 = vpop.f32.mrb[0].mxu0
    %997 = vdwg.mxu0
    %998 = vst [vmem:[#allocation2] sm:$0xff] %v992
    %999 = vst [vmem:[#allocation2 + $0x8] sm:$0xff] %v995
    %v1000 = vld [vmem:[#allocation2] sm:$0x3]
    %v1005 = vunpack.c.l.b16 %v277
    %v1006 = vunpack.c.l.b16 %v278
    %v1007 = vunpack.c.l.b16 %v279
    %v1008 = vunpack.c.l.b16 %v280
    %v1009 = vpack.c.b16 %v1006, %v1005
    %v1010 = vpack.c.b16 %v1008, %v1007
    %1013 = vmatprep.subr.bf16.mxu0 0
    %1014 = vmatpush1.bf16.msra.mxu0 %v1009
    %1015 = vmatprep.subr.bf16.mxu0 0
    %1016 = vmatpush1.bf16.msra.mxu0 %v1010
    %1017 = vmatprep.subr.bf16.mxu0 0
    %1018 = vmatpush1.bf16.msra.mxu0 0
    %1019 = vmatprep.subr.bf16.mxu0 0
    %1020 = vmatpush1.bf16.msra.mxu0 0
    %1021 = vmatprep.subr.bf16.mxu0 0
    %1022 = vmatpush1.bf16.msra.mxu0 0
    %1023 = vmatprep.subr.bf16.mxu0 0
    %1024 = vmatpush1.bf16.msra.mxu0 0
    %1025 = vmatprep.subr.bf16.mxu0 0
    %1026 = vmatpush1.bf16.msra.mxu0 0
    %1027 = vmatprep.subr.bf16.mxu0 0
    %1028 = vmatpush1.bf16.msra.mxu0 0
    %1029 = vmatprep.subr.bf16.mxu0 0
    %1030 = vmatpush1.bf16.msra.mxu0 0
    %1031 = vmatprep.subr.bf16.mxu0 0
    %1032 = vmatpush1.bf16.msra.mxu0 0
    %1033 = vmatprep.subr.bf16.mxu0 0
    %1034 = vmatpush1.bf16.msra.mxu0 0
    %1035 = vmatprep.subr.bf16.mxu0 0
    %1036 = vmatpush1.bf16.msra.mxu0 0
    %1037 = vmatprep.subr.bf16.mxu0 0
    %1038 = vmatpush1.bf16.msra.mxu0 0
    %1039 = vmatprep.subr.bf16.mxu0 0
    %1040 = vmatpush1.bf16.msra.mxu0 0
    %1041 = vmatprep.subr.bf16.mxu0 0
    %1042 = vmatpush1.bf16.msra.mxu0 0
    %1043 = vmatprep.subr.bf16.mxu0 0
    %1044 = vmatpush1.bf16.msra.mxu0 0
    %1045 = vmatprep.mubr.bf16.mxu0 0
    %1046 = vmatmul.mubr.bf16.gmra.mrb[0].mxu0 %v295
    %v1047 = vpop.f32.mrb[0].mxu0
    %v1048 = vadd.f32 0.0, %v1047
    %v1049 = vpop.f32.mrb[0].mxu0
    %v1050 = vpop.f32.mrb[0].mxu0
    %v1051 = vpop.f32.mrb[0].mxu0
    %1052 = vdwg.mxu0
    %v1053 = vadd.f32 %v1000, %v1048
    %v1054 = vxor.u32 %v1053, 2147483648
    %v1055 = vmul.f32 %v1054, 1.442695
    %v1056 = vpow.pop %v1055
    %v1057 = vadd.f32 %v1056, 1.0
    %v1058 = vrcp.pop %v1057
    %v1059 = vmul.f32 1.0, %v1058
    %v1060 = vtanh.pop %v1053
    %v1061 = vmul.f32 %v1059, 0.0
    %1063 = vrot.lane.b32.xlu0 %v1060, 32
    %v1064 = vpop.permute.xlu0 %1063
    %v1066 = vmul.f32 %v1059, %v1064
    %1068 = vrot.lane.b32.xlu0 %v1066, 32
    %v1069 = vpop.permute.xlu0 %1068
    %v1071 = vadd.f32 %v1061, %v1069
    %v1072 = vtanh.pop %v1071
    %1074 = vrot.lane.b32.xlu0 %v1072, 32
    %v1075 = vpop.permute.xlu0 %1074
    %v1077 = vmul.f32 %v1059, %v1075
    %1079 = vrot.lane.b32.xlu0 %v1077, 64
    %v1080 = vpop.permute.xlu0 %1079
    %1082 = vst.msk [vmem:[#allocation3] sm:$0x3] %vm366, %v1080
    %v1083 = vld [vmem:[%s368] sm:$0x3]
    %v1084 = vpack.c.bf16 %v1077, %v1077
    %1086 = vrot.lane.b32.xlu0 %v1084, 64
    %v1087 = vpop.permute.xlu0 %1086
    %v1089 = vsel %vm226, %v1087, 0
    %1091 = vmatprep.subr.bf16.mxu0 0
    %1092 = vmatpush1.bf16.msra.mxu0 %v1009
    %1093 = vmatprep.subr.bf16.mxu0 0
    %1094 = vmatpush1.bf16.msra.mxu0 %v1010
    %1095 = vmatprep.subr.bf16.mxu0 0
    %1096 = vmatpush1.bf16.msra.mxu0 0
    %1097 = vmatprep.subr.bf16.mxu0 0
    %1098 = vmatpush1.bf16.msra.mxu0 0
    %1099 = vmatprep.subr.bf16.mxu0 0
    %1100 = vmatpush1.bf16.msra.mxu0 0
    %1101 = vmatprep.subr.bf16.mxu0 0
    %1102 = vmatpush1.bf16.msra.mxu0 0
    %1103 = vmatprep.subr.bf16.mxu0 0
    %1104 = vmatpush1.bf16.msra.mxu0 0
    %1105 = vmatprep.subr.bf16.mxu0 0
    %1106 = vmatpush1.bf16.msra.mxu0 0
    %1107 = vmatprep.subr.bf16.mxu0 0
    %1108 = vmatpush1.bf16.msra.mxu0 0
    %1109 = vmatprep.subr.bf16.mxu0 0
    %1110 = vmatpush1.bf16.msra.mxu0 0
    %1111 = vmatprep.subr.bf16.mxu0 0
    %1112 = vmatpush1.bf16.msra.mxu0 0
    %1113 = vmatprep.subr.bf16.mxu0 0
    %1114 = vmatpush1.bf16.msra.mxu0 0
    %1115 = vmatprep.subr.bf16.mxu0 0
    %1116 = vmatpush1.bf16.msra.mxu0 0
    %1117 = vmatprep.subr.bf16.mxu0 0
    %1118 = vmatpush1.bf16.msra.mxu0 0
    %1119 = vmatprep.subr.bf16.mxu0 0
    %1120 = vmatpush1.bf16.msra.mxu0 0
    %1121 = vmatprep.subr.bf16.mxu0 0
    %1122 = vmatpush1.bf16.msra.mxu0 0
    %1123 = vmatprep.mubr.bf16.mxu0 0
    %1124 = vmatmul.mubr.bf16.gmra.mrb[0].mxu0 %v1089
    %v1125 = vpop.f32.mrb[0].mxu0
    %v1126 = vadd.f32 0.0, %v1125
    %v1127 = vpop.f32.mrb[0].mxu0
    %v1128 = vpop.f32.mrb[0].mxu0
    %v1129 = vpop.f32.mrb[0].mxu0
    %1130 = vdwg.mxu0
    %v1131 = vadd.f32 %v1083, %v1126
    %v1132 = vxor.u32 %v1131, 2147483648
    %v1133 = vmul.f32 %v1132, 1.442695
    %v1134 = vpow.pop %v1133
    %v1135 = vadd.f32 %v1134, 1.0
    %v1136 = vrcp.pop %v1135
    %v1137 = vmul.f32 1.0, %v1136
    %v1138 = vtanh.pop %v1131
    %v1139 = vmul.f32 %v1137, %v1071
    %1141 = vrot.lane.b32.xlu0 %v1138, 32
    %v1142 = vpop.permute.xlu0 %1141
    %v1144 = vmul.f32 %v1137, %v1142
    %1146 = vrot.lane.b32.xlu0 %v1144, 32
    %v1147 = vpop.permute.xlu0 %1146
    %v1149 = vadd.f32 %v1139, %v1147
    %v1150 = vtanh.pop %v1149
    %1152 = vrot.lane.b32.xlu0 %v1150, 32
    %v1153 = vpop.permute.xlu0 %1152
    %v1155 = vmul.f32 %v1137, %v1153
    %1157 = vrot.lane.b32.xlu0 %v1155, 64
    %v1158 = vpop.permute.xlu0 %1157
    %1160 = vst.msk [vmem:[%s446] sm:$0x3] %vm366, %v1158
    %v1161 = vld [vmem:[%s448] sm:$0x3]
    %v1162 = vpack.c.bf16 %v1155, %v1155
    %1164 = vrot.lane.b32.xlu0 %v1162, 64
    %v1165 = vpop.permute.xlu0 %1164
    %v1167 = vsel %vm226, %v1165, 0
    %1169 = vmatprep.subr.bf16.mxu0 0
    %1170 = vmatpush1.bf16.msra.mxu0 %v1009
    %1171 = vmatprep.subr.bf16.mxu0 0
    %1172 = vmatpush1.bf16.msra.mxu0 %v1010
    %1173 = vmatprep.subr.bf16.mxu0 0
    %1174 = vmatpush1.bf16.msra.mxu0 0
    %1175 = vmatprep.subr.bf16.mxu0 0
    %1176 = vmatpush1.bf16.msra.mxu0 0
    %1177 = vmatprep.subr.bf16.mxu0 0
    %1178 = vmatpush1.bf16.msra.mxu0 0
    %1179 = vmatprep.subr.bf16.mxu0 0
    %1180 = vmatpush1.bf16.msra.mxu0 0
    %1181 = vmatprep.subr.bf16.mxu0 0
    %1182 = vmatpush1.bf16.msra.mxu0 0
    %1183 = vmatprep.subr.bf16.mxu0 0
    %1184 = vmatpush1.bf16.msra.mxu0 0
    %1185 = vmatprep.subr.bf16.mxu0 0
    %1186 = vmatpush1.bf16.msra.mxu0 0
    %1187 = vmatprep.subr.bf16.mxu0 0
    %1188 = vmatpush1.bf16.msra.mxu0 0
    %1189 = vmatprep.subr.bf16.mxu0 0
    %1190 = vmatpush1.bf16.msra.mxu0 0
    %1191 = vmatprep.subr.bf16.mxu0 0
    %1192 = vmatpush1.bf16.msra.mxu0 0
    %1193 = vmatprep.subr.bf16.mxu0 0
    %1194 = vmatpush1.bf16.msra.mxu0 0
    %1195 = vmatprep.subr.bf16.mxu0 0
    %1196 = vmatpush1.bf16.msra.mxu0 0
    %1197 = vmatprep.subr.bf16.mxu0 0
    %1198 = vmatpush1.bf16.msra.mxu0 0
    %1199 = vmatprep.subr.bf16.mxu0 0
    %1200 = vmatpush1.bf16.msra.mxu0 0
    %1201 = vmatprep.mubr.bf16.mxu0 0
    %1202 = vmatmul.mubr.bf16.gmra.mrb[0].mxu0 %v1167
    %v1203 = vpop.f32.mrb[0].mxu0
    %v1204 = vadd.f32 0.0, %v1203
    %v1205 = vpop.f32.mrb[0].mxu0
    %v1206 = vpop.f32.mrb[0].mxu0
    %v1207 = vpop.f32.mrb[0].mxu0
    %1208 = vdwg.mxu0
    %v1209 = vadd.f32 %v1161, %v1204
    %v1210 = vxor.u32 %v1209, 2147483648
    %v1211 = vmul.f32 %v1210, 1.442695
    %v1212 = vpow.pop %v1211
    %v1213 = vadd.f32 %v1212, 1.0
    %v1214 = vrcp.pop %v1213
    %v1215 = vmul.f32 1.0, %v1214
    %v1216 = vtanh.pop %v1209
    %v1217 = vmul.f32 %v1215, %v1149
    %1219 = vrot.lane.b32.xlu0 %v1216, 32
    %v1220 = vpop.permute.xlu0 %1219
    %v1222 = vmul.f32 %v1215, %v1220
    %1224 = vrot.lane.b32.xlu0 %v1222, 32
    %v1225 = vpop.permute.xlu0 %1224
    %v1227 = vadd.f32 %v1217, %v1225
    %v1228 = vtanh.pop %v1227
    %1230 = vrot.lane.b32.xlu0 %v1228, 32
    %v1231 = vpop.permute.xlu0 %1230
    %v1233 = vmul.f32 %v1215, %v1231
    %1235 = vrot.lane.b32.xlu0 %v1233, 64
    %v1236 = vpop.permute.xlu0 %1235
    %1238 = vst.msk [vmem:[%s526] sm:$0x3] %vm366, %v1236
    %v1239 = vld [vmem:[%s528] sm:$0x3]
    %v1240 = vpack.c.bf16 %v1233, %v1233
    %1242 = vrot.lane.b32.xlu0 %v1240, 64
    %v1243 = vpop.permute.xlu0 %1242
    %v1245 = vsel %vm226, %v1243, 0
    %1247 = vmatprep.subr.bf16.mxu0 0
    %1248 = vmatpush1.bf16.msra.mxu0 %v1009
    %1249 = vmatprep.subr.bf16.mxu0 0
    %1250 = vmatpush1.bf16.msra.mxu0 %v1010
    %1251 = vmatprep.subr.bf16.mxu0 0
    %1252 = vmatpush1.bf16.msra.mxu0 0
    %1253 = vmatprep.subr.bf16.mxu0 0
    %1254 = vmatpush1.bf16.msra.mxu0 0
    %1255 = vmatprep.subr.bf16.mxu0 0
    %1256 = vmatpush1.bf16.msra.mxu0 0
    %1257 = vmatprep.subr.bf16.mxu0 0
    %1258 = vmatpush1.bf16.msra.mxu0 0
    %1259 = vmatprep.subr.bf16.mxu0 0
    %1260 = vmatpush1.bf16.msra.mxu0 0
    %1261 = vmatprep.subr.bf16.mxu0 0
    %1262 = vmatpush1.bf16.msra.mxu0 0
    %1263 = vmatprep.subr.bf16.mxu0 0
    %1264 = vmatpush1.bf16.msra.mxu0 0
    %1265 = vmatprep.subr.bf16.mxu0 0
    %1266 = vmatpush1.bf16.msra.mxu0 0
    %1267 = vmatprep.subr.bf16.mxu0 0
    %1268 = vmatpush1.bf16.msra.mxu0 0
    %1269 = vmatprep.subr.bf16.mxu0 0
    %1270 = vmatpush1.bf16.msra.mxu0 0
    %1271 = vmatprep.subr.bf16.mxu0 0
    %1272 = vmatpush1.bf16.msra.mxu0 0
    %1273 = vmatprep.subr.bf16.mxu0 0
    %1274 = vmatpush1.bf16.msra.mxu0 0
    %1275 = vmatprep.subr.bf16.mxu0 0
    %1276 = vmatpush1.bf16.msra.mxu0 0
    %1277 = vmatprep.subr.bf16.mxu0 0
    %1278 = vmatpush1.bf16.msra.mxu0 0
    %1279 = vmatprep.mubr.bf16.mxu0 0
    %1280 = vmatmul.mubr.bf16.gmra.mrb[0].mxu0 %v1245
    %v1281 = vpop.f32.mrb[0].mxu0
    %v1282 = vadd.f32 0.0, %v1281
    %v1283 = vpop.f32.mrb[0].mxu0
    %v1284 = vpop.f32.mrb[0].mxu0
    %v1285 = vpop.f32.mrb[0].mxu0
    %1286 = vdwg.mxu0
    %v1287 = vadd.f32 %v1239, %v1282
    %v1288 = vxor.u32 %v1287, 2147483648
    %v1289 = vmul.f32 %v1288, 1.442695
    %v1290 = vpow.pop %v1289
    %v1291 = vadd.f32 %v1290, 1.0
    %v1292 = vrcp.pop %v1291
    %v1293 = vmul.f32 1.0, %v1292
    %v1294 = vtanh.pop %v1287
    %v1295 = vmul.f32 %v1293, %v1227
    %1297 = vrot.lane.b32.xlu0 %v1294, 32
    %v1298 = vpop.permute.xlu0 %1297
    %v1300 = vmul.f32 %v1293, %v1298
    %1302 = vrot.lane.b32.xlu0 %v1300, 32
    %v1303 = vpop.permute.xlu0 %1302
    %v1305 = vadd.f32 %v1295, %v1303
    %v1306 = vtanh.pop %v1305
    %1308 = vrot.lane.b32.xlu0 %v1306, 32
    %v1309 = vpop.permute.xlu0 %1308
    %v1311 = vmul.f32 %v1293, %v1309
    %1313 = vrot.lane.b32.xlu0 %v1311, 64
    %v1314 = vpop.permute.xlu0 %1313
    %1316 = vst.msk [vmem:[%s606] sm:$0x3] %vm366, %v1314
    %v1317 = vld [vmem:[%s608] sm:$0x3]
    %v1318 = vpack.c.bf16 %v1311, %v1311
    %1320 = vrot.lane.b32.xlu0 %v1318, 64
    %v1321 = vpop.permute.xlu0 %1320
    %v1323 = vsel %vm226, %v1321, 0
    %1325 = vmatprep.subr.bf16.mxu0 0
    %1326 = vmatpush1.bf16.msra.mxu0 %v1009
    %1327 = vmatprep.subr.bf16.mxu0 0
    %1328 = vmatpush1.bf16.msra.mxu0 %v1010
    %1329 = vmatprep.subr.bf16.mxu0 0
    %1330 = vmatpush1.bf16.msra.mxu0 0
    %1331 = vmatprep.subr.bf16.mxu0 0
    %1332 = vmatpush1.bf16.msra.mxu0 0
    %1333 = vmatprep.subr.bf16.mxu0 0
    %1334 = vmatpush1.bf16.msra.mxu0 0
    %1335 = vmatprep.subr.bf16.mxu0 0
    %1336 = vmatpush1.bf16.msra.mxu0 0
    %1337 = vmatprep.subr.bf16.mxu0 0
    %1338 = vmatpush1.bf16.msra.mxu0 0
    %1339 = vmatprep.subr.bf16.mxu0 0
    %1340 = vmatpush1.bf16.msra.mxu0 0
    %1341 = vmatprep.subr.bf16.mxu0 0
    %1342 = vmatpush1.bf16.msra.mxu0 0
    %1343 = vmatprep.subr.bf16.mxu0 0
    %1344 = vmatpush1.bf16.msra.mxu0 0
    %1345 = vmatprep.subr.bf16.mxu0 0
    %1346 = vmatpush1.bf16.msra.mxu0 0
    %1347 = vmatprep.subr.bf16.mxu0 0
    %1348 = vmatpush1.bf16.msra.mxu0 0
    %1349 = vmatprep.subr.bf16.mxu0 0
    %1350 = vmatpush1.bf16.msra.mxu0 0
    %1351 = vmatprep.subr.bf16.mxu0 0
    %1352 = vmatpush1.bf16.msra.mxu0 0
    %1353 = vmatprep.subr.bf16.mxu0 0
    %1354 = vmatpush1.bf16.msra.mxu0 0
    %1355 = vmatprep.subr.bf16.mxu0 0
    %1356 = vmatpush1.bf16.msra.mxu0 0
    %1357 = vmatprep.mubr.bf16.mxu0 0
    %1358 = vmatmul.mubr.bf16.gmra.mrb[0].mxu0 %v1323
    %v1359 = vpop.f32.mrb[0].mxu0
    %v1360 = vadd.f32 0.0, %v1359
    %v1361 = vpop.f32.mrb[0].mxu0
    %v1362 = vpop.f32.mrb[0].mxu0
    %v1363 = vpop.f32.mrb[0].mxu0
    %1364 = vdwg.mxu0
    %v1365 = vadd.f32 %v1317, %v1360
    %v1366 = vxor.u32 %v1365, 2147483648
    %v1367 = vmul.f32 %v1366, 1.442695
    %v1368 = vpow.pop %v1367
    %v1369 = vadd.f32 %v1368, 1.0
    %v1370 = vrcp.pop %v1369
    %v1371 = vmul.f32 1.0, %v1370
    %v1372 = vtanh.pop %v1365
    %v1373 = vmul.f32 %v1371, %v1305
    %1375 = vrot.lane.b32.xlu0 %v1372, 32
    %v1376 = vpop.permute.xlu0 %1375
    %v1378 = vmul.f32 %v1371, %v1376
    %1380 = vrot.lane.b32.xlu0 %v1378, 32
    %v1381 = vpop.permute.xlu0 %1380
    %v1383 = vadd.f32 %v1373, %v1381
    %v1384 = vtanh.pop %v1383
    %1386 = vrot.lane.b32.xlu0 %v1384, 32
    %v1387 = vpop.permute.xlu0 %1386
    %v1389 = vmul.f32 %v1371, %v1387
    %1391 = vrot.lane.b32.xlu0 %v1389, 64
    %v1392 = vpop.permute.xlu0 %1391
    %1394 = vst.msk [vmem:[%s686] sm:$0x3] %vm366, %v1392
    %v1395 = vld [vmem:[%s688] sm:$0x3]
    %v1396 = vpack.c.bf16 %v1389, %v1389
    %1398 = vrot.lane.b32.xlu0 %v1396, 64
    %v1399 = vpop.permute.xlu0 %1398
    %v1401 = vsel %vm226, %v1399, 0
    %1403 = vmatprep.subr.bf16.mxu0 0
    %1404 = vmatpush1.bf16.msra.mxu0 %v1009
    %1405 = vmatprep.subr.bf16.mxu0 0
    %1406 = vmatpush1.bf16.msra.mxu0 %v1010
    %1407 = vmatprep.subr.bf16.mxu0 0
    %1408 = vmatpush1.bf16.msra.mxu0 0
    %1409 = vmatprep.subr.bf16.mxu0 0
    %1410 = vmatpush1.bf16.msra.mxu0 0
    %1411 = vmatprep.subr.bf16.mxu0 0
    %1412 = vmatpush1.bf16.msra.mxu0 0
    %1413 = vmatprep.subr.bf16.mxu0 0
    %1414 = vmatpush1.bf16.msra.mxu0 0
    %1415 = vmatprep.subr.bf16.mxu0 0
    %1416 = vmatpush1.bf16.msra.mxu0 0
    %1417 = vmatprep.subr.bf16.mxu0 0
    %1418 = vmatpush1.bf16.msra.mxu0 0
    %1419 = vmatprep.subr.bf16.mxu0 0
    %1420 = vmatpush1.bf16.msra.mxu0 0
    %1421 = vmatprep.subr.bf16.mxu0 0
    %1422 = vmatpush1.bf16.msra.mxu0 0
    %1423 = vmatprep.subr.bf16.mxu0 0
    %1424 = vmatpush1.bf16.msra.mxu0 0
    %1425 = vmatprep.subr.bf16.mxu0 0
    %1426 = vmatpush1.bf16.msra.mxu0 0
    %1427 = vmatprep.subr.bf16.mxu0 0
    %1428 = vmatpush1.bf16.msra.mxu0 0
    %1429 = vmatprep.subr.bf16.mxu0 0
    %1430 = vmatpush1.bf16.msra.mxu0 0
    %1431 = vmatprep.subr.bf16.mxu0 0
    %1432 = vmatpush1.bf16.msra.mxu0 0
    %1433 = vmatprep.subr.bf16.mxu0 0
    %1434 = vmatpush1.bf16.msra.mxu0 0
    %1435 = vmatprep.mubr.bf16.mxu0 0
    %1436 = vmatmul.mubr.bf16.gmra.mrb[0].mxu0 %v1401
    %v1437 = vpop.f32.mrb[0].mxu0
    %v1438 = vadd.f32 0.0, %v1437
    %v1439 = vpop.f32.mrb[0].mxu0
    %v1440 = vpop.f32.mrb[0].mxu0
    %v1441 = vpop.f32.mrb[0].mxu0
    %1442 = vdwg.mxu0
    %v1443 = vadd.f32 %v1395, %v1438
    %v1444 = vxor.u32 %v1443, 2147483648
    %v1445 = vmul.f32 %v1444, 1.442695
    %v1446 = vpow.pop %v1445
    %v1447 = vadd.f32 %v1446, 1.0
    %v1448 = vrcp.pop %v1447
    %v1449 = vmul.f32 1.0, %v1448
    %v1450 = vtanh.pop %v1443
    %v1451 = vmul.f32 %v1449, %v1383
    %1453 = vrot.lane.b32.xlu0 %v1450, 32
    %v1454 = vpop.permute.xlu0 %1453
    %v1456 = vmul.f32 %v1449, %v1454
    %1458 = vrot.lane.b32.xlu0 %v1456, 32
    %v1459 = vpop.permute.xlu0 %1458
    %v1461 = vadd.f32 %v1451, %v1459
    %v1462 = vtanh.pop %v1461
    %1464 = vrot.lane.b32.xlu0 %v1462, 32
    %v1465 = vpop.permute.xlu0 %1464
    %v1467 = vmul.f32 %v1449, %v1465
    %1469 = vrot.lane.b32.xlu0 %v1467, 64
    %v1470 = vpop.permute.xlu0 %1469
    %1472 = vst.msk [vmem:[%s766] sm:$0x3] %vm366, %v1470
    %v1473 = vld [vmem:[%s768] sm:$0x3]
    %v1474 = vpack.c.bf16 %v1467, %v1467
    %1476 = vrot.lane.b32.xlu0 %v1474, 64
    %v1477 = vpop.permute.xlu0 %1476
    %v1479 = vsel %vm226, %v1477, 0
    %1481 = vmatprep.subr.bf16.mxu0 0
    %1482 = vmatpush1.bf16.msra.mxu0 %v1009
    %1483 = vmatprep.subr.bf16.mxu0 0
    %1484 = vmatpush1.bf16.msra.mxu0 %v1010
    %1485 = vmatprep.subr.bf16.mxu0 0
    %1486 = vmatpush1.bf16.msra.mxu0 0
    %1487 = vmatprep.subr.bf16.mxu0 0
    %1488 = vmatpush1.bf16.msra.mxu0 0
    %1489 = vmatprep.subr.bf16.mxu0 0
    %1490 = vmatpush1.bf16.msra.mxu0 0
    %1491 = vmatprep.subr.bf16.mxu0 0
    %1492 = vmatpush1.bf16.msra.mxu0 0
    %1493 = vmatprep.subr.bf16.mxu0 0
    %1494 = vmatpush1.bf16.msra.mxu0 0
    %1495 = vmatprep.subr.bf16.mxu0 0
    %1496 = vmatpush1.bf16.msra.mxu0 0
    %1497 = vmatprep.subr.bf16.mxu0 0
    %1498 = vmatpush1.bf16.msra.mxu0 0
    %1499 = vmatprep.subr.bf16.mxu0 0
    %1500 = vmatpush1.bf16.msra.mxu0 0
    %1501 = vmatprep.subr.bf16.mxu0 0
    %1502 = vmatpush1.bf16.msra.mxu0 0
    %1503 = vmatprep.subr.bf16.mxu0 0
    %1504 = vmatpush1.bf16.msra.mxu0 0
    %1505 = vmatprep.subr.bf16.mxu0 0
    %1506 = vmatpush1.bf16.msra.mxu0 0
    %1507 = vmatprep.subr.bf16.mxu0 0
    %1508 = vmatpush1.bf16.msra.mxu0 0
    %1509 = vmatprep.subr.bf16.mxu0 0
    %1510 = vmatpush1.bf16.msra.mxu0 0
    %1511 = vmatprep.subr.bf16.mxu0 0
    %1512 = vmatpush1.bf16.msra.mxu0 0
    %1513 = vmatprep.mubr.bf16.mxu0 0
    %1514 = vmatmul.mubr.bf16.gmra.mrb[0].mxu0 %v1479
    %v1515 = vpop.f32.mrb[0].mxu0
    %v1516 = vadd.f32 0.0, %v1515
    %v1517 = vpop.f32.mrb[0].mxu0
    %v1518 = vpop.f32.mrb[0].mxu0
    %v1519 = vpop.f32.mrb[0].mxu0
    %1520 = vdwg.mxu0
    %v1521 = vadd.f32 %v1473, %v1516
    %v1522 = vxor.u32 %v1521, 2147483648
    %v1523 = vmul.f32 %v1522, 1.442695
    %v1524 = vpow.pop %v1523
    %v1525 = vadd.f32 %v1524, 1.0
    %v1526 = vrcp.pop %v1525
    %v1527 = vmul.f32 1.0, %v1526
    %v1528 = vtanh.pop %v1521
    %v1529 = vmul.f32 %v1527, %v1461
    %1531 = vrot.lane.b32.xlu0 %v1528, 32
    %v1532 = vpop.permute.xlu0 %1531
    %v1534 = vmul.f32 %v1527, %v1532
    %1536 = vrot.lane.b32.xlu0 %v1534, 32
    %v1537 = vpop.permute.xlu0 %1536
    %v1539 = vadd.f32 %v1529, %v1537
    %v1540 = vtanh.pop %v1539
    %1542 = vrot.lane.b32.xlu0 %v1540, 32
    %v1543 = vpop.permute.xlu0 %1542
    %v1545 = vmul.f32 %v1527, %v1543
    %1547 = vrot.lane.b32.xlu0 %v1545, 64
    %v1548 = vpop.permute.xlu0 %1547
    %1550 = vst.msk [vmem:[%s846] sm:$0x3] %vm366, %v1548
    %v1551 = vld [vmem:[%s848] sm:$0x3]
    %v1552 = vpack.c.bf16 %v1545, %v1545
    %1554 = vrot.lane.b32.xlu0 %v1552, 64
    %v1555 = vpop.permute.xlu0 %1554
    %v1557 = vsel %vm226, %v1555, 0
    %1559 = vmatprep.subr.bf16.mxu0 0
    %1560 = vmatpush1.bf16.msra.mxu0 %v1009
    %1561 = vmatprep.subr.bf16.mxu0 0
    %1562 = vmatpush1.bf16.msra.mxu0 %v1010
    %1563 = vmatprep.subr.bf16.mxu0 0
    %1564 = vmatpush1.bf16.msra.mxu0 0
    %1565 = vmatprep.subr.bf16.mxu0 0
    %1566 = vmatpush1.bf16.msra.mxu0 0
    %1567 = vmatprep.subr.bf16.mxu0 0
    %1568 = vmatpush1.bf16.msra.mxu0 0
    %1569 = vmatprep.subr.bf16.mxu0 0
    %1570 = vmatpush1.bf16.msra.mxu0 0
    %1571 = vmatprep.subr.bf16.mxu0 0
    %1572 = vmatpush1.bf16.msra.mxu0 0
    %1573 = vmatprep.subr.bf16.mxu0 0
    %1574 = vmatpush1.bf16.msra.mxu0 0
    %1575 = vmatprep.subr.bf16.mxu0 0
    %1576 = vmatpush1.bf16.msra.mxu0 0
    %1577 = vmatprep.subr.bf16.mxu0 0
    %1578 = vmatpush1.bf16.msra.mxu0 0
    %1579 = vmatprep.subr.bf16.mxu0 0
    %1580 = vmatpush1.bf16.msra.mxu0 0
    %1581 = vmatprep.subr.bf16.mxu0 0
    %1582 = vmatpush1.bf16.msra.mxu0 0
    %1583 = vmatprep.subr.bf16.mxu0 0
    %1584 = vmatpush1.bf16.msra.mxu0 0
    %1585 = vmatprep.subr.bf16.mxu0 0
    %1586 = vmatpush1.bf16.msra.mxu0 0
    %1587 = vmatprep.subr.bf16.mxu0 0
    %1588 = vmatpush1.bf16.msra.mxu0 0
    %1589 = vmatprep.subr.bf16.mxu0 0
    %1590 = vmatpush1.bf16.msra.mxu0 0
    %1591 = vmatprep.mubr.bf16.mxu0 0
    %1592 = vmatmul.mubr.bf16.gmra.mrb[0].mxu0 %v1557
    %v1593 = vpop.f32.mrb[0].mxu0
    %v1594 = vadd.f32 0.0, %v1593
    %v1595 = vpop.f32.mrb[0].mxu0
    %v1596 = vpop.f32.mrb[0].mxu0
    %v1597 = vpop.f32.mrb[0].mxu0
    %1598 = vdwg.mxu0
    %v1599 = vadd.f32 %v1551, %v1594
    %v1600 = vxor.u32 %v1599, 2147483648
    %v1601 = vmul.f32 %v1600, 1.442695
    %v1602 = vpow.pop %v1601
    %v1603 = vadd.f32 %v1602, 1.0
    %v1604 = vrcp.pop %v1603
    %v1605 = vmul.f32 1.0, %v1604
    %v1606 = vtanh.pop %v1599
    %v1607 = vmul.f32 %v1605, %v1539
    %1609 = vrot.lane.b32.xlu0 %v1606, 32
    %v1610 = vpop.permute.xlu0 %1609
    %v1612 = vmul.f32 %v1605, %v1610
    %1614 = vrot.lane.b32.xlu0 %v1612, 32
    %v1615 = vpop.permute.xlu0 %1614
    %v1617 = vadd.f32 %v1607, %v1615
    %v1618 = vtanh.pop %v1617
    %1620 = vrot.lane.b32.xlu0 %v1618, 32
    %v1621 = vpop.permute.xlu0 %1620
    %v1623 = vmul.f32 %v1605, %v1621
    %1625 = vrot.lane.b32.xlu0 %v1623, 64
    %v1626 = vpop.permute.xlu0 %1625
    %1628 = vst.msk [vmem:[%s926] sm:$0x3] %vm366, %v1626
    %v1629 = vld [vmem:[#allocation3] sm:$0xff]
    %v1630 = vld [vmem:[#allocation3 + $0x8] sm:$0xff]
    %v1631 = vpack.c.bf16 %v1630, %v1629
    %v1632 = vld [vmem:[%s8] sm:$0xf]
    %v1633 = vld [vmem:[%s8 + $0x4] sm:$0xf]
    %v1634 = vld [vmem:[%s8 + $0x8] sm:$0xf]
    %v1635 = vld [vmem:[%s8 + $0xc] sm:$0xf]
    %v1636 = vld [vmem:[%s9] sm:$0x1]
    %v1638 = vlaneseq
    %v1639 = vshrl.u32 %v1638, 7
    %v1640 = vsub.s32 0, %v1639
    %v1641 = vrot.slane %v1636, %v1640
    %v1647 = vunpack.c.l.b16 %v1632
    %v1648 = vunpack.c.l.b16 %v1633
    %v1649 = vunpack.c.l.b16 %v1634
    %v1650 = vunpack.c.l.b16 %v1635
    %v1651 = vpack.c.b16 %v1648, %v1647
    %v1652 = vpack.c.b16 %v1650, %v1649
    %v1656 = vsel %vm226, %v1631, 0
    %1658 = vmatprep.subr.bf16.mxu0 0
    %1659 = vmatpush1.bf16.msra.mxu0 %v1651
    %1660 = vmatprep.subr.bf16.mxu0 0
    %1661 = vmatpush1.bf16.msra.mxu0 %v1652
    %1662 = vmatprep.subr.bf16.mxu0 0
    %1663 = vmatpush1.bf16.msra.mxu0 0
    %1664 = vmatprep.subr.bf16.mxu0 0
    %1665 = vmatpush1.bf16.msra.mxu0 0
    %1666 = vmatprep.subr.bf16.mxu0 0
    %1667 = vmatpush1.bf16.msra.mxu0 0
    %1668 = vmatprep.subr.bf16.mxu0 0
    %1669 = vmatpush1.bf16.msra.mxu0 0
    %1670 = vmatprep.subr.bf16.mxu0 0
    %1671 = vmatpush1.bf16.msra.mxu0 0
    %1672 = vmatprep.subr.bf16.mxu0 0
    %1673 = vmatpush1.bf16.msra.mxu0 0
    %1674 = vmatprep.subr.bf16.mxu0 0
    %1675 = vmatpush1.bf16.msra.mxu0 0
    %1676 = vmatprep.subr.bf16.mxu0 0
    %1677 = vmatpush1.bf16.msra.mxu0 0
    %1678 = vmatprep.subr.bf16.mxu0 0
    %1679 = vmatpush1.bf16.msra.mxu0 0
    %1680 = vmatprep.subr.bf16.mxu0 0
    %1681 = vmatpush1.bf16.msra.mxu0 0
    %1682 = vmatprep.subr.bf16.mxu0 0
    %1683 = vmatpush1.bf16.msra.mxu0 0
    %1684 = vmatprep.subr.bf16.mxu0 0
    %1685 = vmatpush1.bf16.msra.mxu0 0
    %1686 = vmatprep.subr.bf16.mxu0 0
    %1687 = vmatpush1.bf16.msra.mxu0 0
    %1688 = vmatprep.subr.bf16.mxu0 0
    %1689 = vmatpush1.bf16.msra.mxu0 0
    %1690 = vmatprep.mubr.bf16.mxu0 0
    %1691 = vmatmul.mubr.bf16.gmra.mrb[0].mxu0 %v1656
    %v1692 = vpop.f32.mrb[0].mxu0
    %v1693 = vadd.f32 %v1641, %v1692
    %v1694 = vpop.f32.mrb[0].mxu0
    %v1695 = vpop.f32.mrb[0].mxu0
    %v1696 = vadd.f32 %v1641, %v1695
    %v1697 = vpop.f32.mrb[0].mxu0
    %1698 = vdwg.mxu0
    %vm1699 = vcmask 64512
    %1700 = vst.msk [vmem:[%s10] sm:$0xff] %vm1699, %v1693
    %1701 = vst.msk [vmem:[%s10 + $0x8] sm:$0xff] %vm1699, %v1696
    // Predicated region
    $region46: #{lstm_ner_forward.1} parent=1 // pred_check
      _
    $region47: #{lstm_ner_forward.1} parent=1 // pred_check_branch
      %1703 = sbr.rel (0) target = $region49
    $region48: #{lstm_ner_forward.1} parent=1 // pred_region
      _
    $region49: #{lstm_ner_forward.1} parent=1 // pred_fallthru
      _
    // Predicated region
    $region50: #{lstm_ner_forward.1} parent=1 // pred_check
      _
    $region51: #{lstm_ner_forward.1} parent=1 // pred_check_branch
      %1705 = sbr.rel (0) target = $region53
    $region52: #{lstm_ner_forward.1} parent=1 // pred_region
      _
    $region53: #{lstm_ner_forward.1} parent=1 // pred_fallthru
      _
    %1706 = vsyncpa [#allocation5], 1

</llo_original>
